<compile_context>
chip_gen: v7x
topology: tpu7x:2x2x1
jax: 0.10.0
libtpu: 0.0.40
codegen_flags: <defaults>
</compile_context>

<pallas_src>
import functools

import jax
import jax.numpy as jnp
from jax import lax
from jax.experimental import pallas as pl
from jax.experimental.pallas import tpu as pltpu


# 3x3 tap order shared by wrapper (mask construction, weight layout) and kernel.
_TAPS = tuple((dy, dx) for dy in range(3) for dx in range(3))

_BT_CAP = 8  # cap on the per-step batch tile (bounds the static unroll / live ranges)


def _pick_batch_tile(B, Cin, Cout, HW, in_itemsize):
    """Largest divisor of B (capped) whose double-buffered in+out tiles stay well under VMEM."""
    budget = 8 * 1024 * 1024                       # conservative across v5e/v6e/v7x scoped VMEM
    per_img = 2 * HW * (Cin * in_itemsize + Cout * 4)
    bt = max(1, min(B, _BT_CAP, budget // max(per_img, 1)))
    while B % bt:                                  # need a clean divisor for full blocks
        bt -= 1
    return bt


def _coordconv_kernel(x_ref, aux_ref, w_ref, o_ref, *, H, W, cpad, bt):
    # x_ref  : (bt, Cin, H*W)        input batch tile, native dtype, channels on sublanes
    # aux_ref: (8 + cpad-Cin, H*W)   resident constants: rows [0:8) = {0,1} edge masks for the 8
    #                                non-centre taps (tap order, centre skipped);
    #                                rows [8:) = xx, yy, ones, zero-pad coordinate channels
    # w_ref  : (9, Cout, cpad)       BN-folded weight, one (Cout, cpad) slice per tap; the centre
    #                                tap's column at channel Cin+2 carries the BN bias
    # o_ref  : (bt, Cout, H*W)       output tile (lane-dense stores)
    HW = H * W
    Cin = x_ref.shape[1]
    Cout = o_ref.shape[1]
    crows = cpad - Cin

    coords = aux_ref[8:8 + crows, :]                         # (crows, HW), tile-aligned slice

    for b in range(bt):                                      # bt is small & static (<= _BT_CAP)
        # Coordinate-augmented input for this image: [x_b ; xx ; yy ; ones ; zeros] -> (cpad, HW)
        a = jnp.concatenate([x_ref[b].astype(jnp.float32), coords], axis=0)

        # 3x3 conv with zero padding 1 as 9 accumulated per-tap matmuls. Tap (dy, dx) reads input
        # position (h+dy-1, w+dx-1): a lane roll by the flat shift, with wrap-around / row-crossing
        # lanes zeroed by the precomputed edge mask.
        acc = jnp.zeros((Cout, HW), jnp.float32)
        mi = 0
        for t, (dy, dx) in enumerate(_TAPS):
            s = (dy - 1) * W + (dx - 1)                      # flat-index shift of this tap
            rolled = a if s == 0 else pltpu.roll(a, shift=(-s) % HW, axis=1)
            if (dy, dx) != (1, 1):
                rolled = rolled * aux_ref[mi:mi + 1, :]      # zero taps outside the image
                mi += 1
            acc = acc + jnp.dot(w_ref[t], rolled, preferred_element_type=jnp.float32)

        # ReLU; BN scale already folded into w, BN bias rides on the ones channel.
        o_ref[b] = jnp.maximum(acc, 0.0).astype(o_ref.dtype)


def coord_conv(x_nchw, w_oihw, gamma, beta, running_mean, running_var, eps=1e-5):
    """CoordConv forward (coord concat -> 3x3 conv pad 1, no bias -> eval-mode BN -> ReLU). NCHW."""
    B, Cin, H, W = x_nchw.shape
    Cout, Cin2, KH, KW = w_oihw.shape
    assert (KH, KW) == (3, 3) and Cin2 == Cin + 2
    HW = H * W

    # Channel padding: Cin+2 conv channels + 1 bias ("ones") channel, rounded up to 8 sublanes.
    cpad = ((Cin2 + 1 + 7) // 8) * 8
    crows = cpad - Cin

    # ---- fold eval-mode BatchNorm into the weight (scale) + a centre-tap bias column ----------
    scale = (gamma / jnp.sqrt(running_var + eps)).astype(jnp.float32)
    bias = (beta - running_mean * scale).astype(jnp.float32)
    w = jnp.transpose(w_oihw.astype(jnp.float32), (0, 2, 3, 1)) * scale[:, None, None, None]
    w_full = jnp.zeros((Cout, 3, 3, cpad), jnp.float32)
    w_full = w_full.at[:, :, :, :Cin2].set(w)                  # scaled conv taps
    w_full = w_full.at[:, 1, 1, Cin2].set(bias)                # BN bias via the ones channel
    w_taps = jnp.transpose(w_full, (1, 2, 0, 3)).reshape(9, Cout, cpad)   # (9, Cout, cpad)

    # ---- hoisted per-pixel constants (resident in VMEM across the whole grid) ----------------
    ys = jnp.linspace(-1.0, 1.0, H, dtype=jnp.float32)         # torch.linspace semantics
    xs = jnp.linspace(-1.0, 1.0, W, dtype=jnp.float32)
    yy, xx = jnp.meshgrid(ys, xs, indexing="ij")               # (H, W) each
    coord_rows = [xx.reshape(1, HW), yy.reshape(1, HW), jnp.ones((1, HW), jnp.float32)]
    if crows > 3:
        coord_rows.append(jnp.zeros((crows - 3, HW), jnp.float32))
    hh = jnp.arange(H, dtype=jnp.int32)[:, None]
    ww = jnp.arange(W, dtype=jnp.int32)[None, :]
    mask_rows = []
    for dy, dx in _TAPS:
        if (dy, dx) == (1, 1):
            continue
        m = ((hh + (dy - 1) >= 0) & (hh + (dy - 1) < H)
             & (ww + (dx - 1) >= 0) & (ww + (dx - 1) < W))
        mask_rows.append(m.astype(jnp.float32).reshape(1, HW))
    aux = jnp.concatenate(mask_rows + coord_rows, axis=0)      # (8 + crows, HW)

    # ---- batch folding: several images per grid step to amortize fixed per-step cost ----------
    in_itemsize = jnp.dtype(x_nchw.dtype).itemsize
    bt = _pick_batch_tile(B, Cin, Cout, HW, in_itemsize)

    x_flat = x_nchw.reshape(B, Cin, HW)                        # free reshape, native dtype (no upcast)

    out_dtype = x_nchw.dtype
    cost = pl.CostEstimate(
        flops=2 * B * Cout * 9 * cpad * HW,
        transcendentals=0,
        bytes_accessed=(B * Cin * HW * in_itemsize
                        + w_taps.size * 4 + aux.size * 4
                        + B * Cout * HW * jnp.dtype(out_dtype).itemsize),
    )

    kernel = functools.partial(_coordconv_kernel, H=H, W=W, cpad=cpad, bt=bt)
    out = pl.pallas_call(
        kernel,
        out_shape=jax.ShapeDtypeStruct((B, Cout, HW), out_dtype),
        grid_spec=pl.GridSpec(
            grid=(B // bt,),
            in_specs=[
                pl.BlockSpec((bt, Cin, HW), lambda i: (i, 0, 0)),
                pl.BlockSpec((8 + crows, HW), lambda i: (0, 0)),      # resident constants
                pl.BlockSpec((9, Cout, cpad), lambda i: (0, 0, 0)),   # resident weight
            ],
            out_specs=pl.BlockSpec((bt, Cout, HW), lambda i: (i, 0, 0)),
        ),
        compiler_params=pltpu.CompilerParams(dimension_semantics=("parallel",)),
        cost_estimate=cost,
    )(x_flat, aux, w_taps)

    return out.reshape(B, Cout, H, W)                          # free reshape back to NCHW


def _reference(x_nchw, w_oihw, gamma, beta, running_mean, running_var, eps=1e-5):
    """Pure-JAX reference of the same forward pass (for correctness check)."""
    x = jnp.transpose(x_nchw, (0, 2, 3, 1)).astype(jnp.float32)  # NHWC
    B, H, W, _ = x.shape
    xr = jnp.linspace(-1.0, 1.0, W, dtype=jnp.float32)
    yr = jnp.linspace(-1.0, 1.0, H, dtype=jnp.float32)
    yy, xx = jnp.meshgrid(yr, xr, indexing="ij")
    xx = jnp.broadcast_to(xx[None, :, :, None], (B, H, W, 1))
    yy = jnp.broadcast_to(yy[None, :, :, None], (B, H, W, 1))
    xc = jnp.concatenate([x, xx, yy], axis=-1)
    w = jnp.transpose(w_oihw, (2, 3, 1, 0)).astype(jnp.float32)  # HWIO
    y = lax.conv_general_dilated(
        xc, w, window_strides=(1, 1), padding=((1, 1), (1, 1)),
        dimension_numbers=("NHWC", "HWIO", "NHWC"))
    scale = gamma / jnp.sqrt(running_var + eps)
    bias = beta - running_mean * scale
    y = jnp.maximum(y * scale + bias, 0.0)
    return jnp.transpose(y, (0, 3, 1, 2))


if __name__ == "__main__":
    B, Cin, H, W = 2, 4, 16, 16
    Cout, K = 8, 3

    key = jax.random.PRNGKey(0)
    k_x, k_w, k_g, k_b, k_m, k_v = jax.random.split(key, 6)

    x = jax.random.normal(k_x, (B, Cin, H, W), dtype=jnp.float32)               # NCHW
    w = jax.random.normal(k_w, (Cout, Cin + 2, K, K), dtype=jnp.float32) * 0.1  # OIHW
    gamma = 1.0 + 0.1 * jax.random.normal(k_g, (Cout,), dtype=jnp.float32)
    beta = 0.1 * jax.random.normal(k_b, (Cout,), dtype=jnp.float32)
    running_mean = 0.1 * jax.random.normal(k_m, (Cout,), dtype=jnp.float32)
    running_var = 1.0 + 0.1 * jax.random.uniform(k_v, (Cout,), dtype=jnp.float32)

    out = coord_conv(x, w, gamma, beta, running_mean, running_var)
    out = jax.block_until_ready(out)

    ref = _reference(x, w, gamma, beta, running_mean, running_var)
    assert out.shape == (B, Cout, H, W), out.shape
    max_err = float(jnp.max(jnp.abs(out - ref)))
    assert jnp.allclose(out, ref, atol=1e-4, rtol=1e-4), max_err

    print("KERNEL_OK")
</pallas_src>

<mosaic_0001>
module attributes {stable_mosaic.version = 11 : i64} {
  func.func @_coordconv_kernel(%arg0: i32, %arg1: memref<2x4x256xf32, #tpu.memory_space<vmem>>, %arg2: memref<12x256xf32, #tpu.memory_space<vmem>>, %arg3: memref<9x8x8xf32, #tpu.memory_space<vmem>>, %arg4: memref<2x8x256xf32, #tpu.memory_space<vmem>>) attributes {dimension_semantics = [#tpu.dimension_semantics<parallel>], iteration_bounds = array<i64: 1>, scalar_prefetch = 0 : i64, scratch_operands = 0 : i64, tpu.core_type = #tpu.core_type<tc>, window_params = [{transform_indices = @transform_0, window_bounds = array<i64: 2, 4, 256>}, {pipeline_mode = #tpu.pipeline_mode<synchronous>, transform_indices = @transform_1, window_bounds = array<i64: 12, 256>}, {pipeline_mode = #tpu.pipeline_mode<synchronous>, transform_indices = @transform_2, window_bounds = array<i64: 9, 8, 8>}, {transform_indices = @transform_3, window_bounds = array<i64: 2, 8, 256>}]} {
    %c8 = arith.constant 8 : index
    %c0 = arith.constant 0 : index
    %0 = vector.load %arg2[%c8, %c0] : memref<12x256xf32, #tpu.memory_space<vmem>>, vector<4x256xf32>
    %c0_0 = arith.constant 0 : index
    %c0_1 = arith.constant 0 : index
    %c0_2 = arith.constant 0 : index
    %1 = vector.load %arg1[%c0_0, %c0_1, %c0_2] : memref<2x4x256xf32, #tpu.memory_space<vmem>>, vector<1x4x256xf32>
    %2 = vector.shape_cast %1 : vector<1x4x256xf32> to vector<4x256xf32>
    %3 = tpu.concatenate %2, %0 in 0 : vector<4x256xf32>, vector<4x256xf32> -> vector<8x256xf32>
    %cst = arith.constant 0.000000e+00 : f32
    %4 = vector.broadcast %cst : f32 to vector<8x256xf32>
    %c17_i32 = arith.constant 17 : i32
    %5 = tpu.dynamic_rotate %3 by %c17_i32 dim 1 : vector<8x256xf32>, i32 -> vector<8x256xf32>
    %c0_3 = arith.constant 0 : index
    %c0_4 = arith.constant 0 : index
    %6 = vector.load %arg2[%c0_3, %c0_4] : memref<12x256xf32, #tpu.memory_space<vmem>>, vector<1x256xf32>
    %7 = vector.broadcast %6 : vector<1x256xf32> to vector<8x256xf32>
    %8 = arith.mulf %5, %7 : vector<8x256xf32>
    %c0_5 = arith.constant 0 : index
    %c0_6 = arith.constant 0 : index
    %c0_7 = arith.constant 0 : index
    %9 = vector.load %arg3[%c0_5, %c0_6, %c0_7] : memref<9x8x8xf32, #tpu.memory_space<vmem>>, vector<1x8x8xf32>
    %10 = vector.shape_cast %9 : vector<1x8x8xf32> to vector<8x8xf32>
    %cst_8 = arith.constant dense<0.000000e+00> : vector<8x256xf32>
    %11 = tpu.matmul %10, %8, %cst_8 {dimension_numbers = #tpu.dot_dimension_numbers<[1], [0], [0], [1], [0, 0, 1, 1], [], []>} : vector<8x8xf32>, vector<8x256xf32>, vector<8x256xf32> -> vector<8x256xf32>
    %12 = arith.addf %4, %11 : vector<8x256xf32>
    %c16_i32 = arith.constant 16 : i32
    %13 = tpu.dynamic_rotate %3 by %c16_i32 dim 1 : vector<8x256xf32>, i32 -> vector<8x256xf32>
    %c1 = arith.constant 1 : index
    %c0_9 = arith.constant 0 : index
    %14 = vector.load %arg2[%c1, %c0_9] : memref<12x256xf32, #tpu.memory_space<vmem>>, vector<1x256xf32>
    %15 = vector.broadcast %14 : vector<1x256xf32> to vector<8x256xf32>
    %16 = arith.mulf %13, %15 : vector<8x256xf32>
    %c1_10 = arith.constant 1 : index
    %c0_11 = arith.constant 0 : index
    %c0_12 = arith.constant 0 : index
    %17 = vector.load %arg3[%c1_10, %c0_11, %c0_12] : memref<9x8x8xf32, #tpu.memory_space<vmem>>, vector<1x8x8xf32>
    %18 = vector.shape_cast %17 : vector<1x8x8xf32> to vector<8x8xf32>
    %cst_13 = arith.constant dense<0.000000e+00> : vector<8x256xf32>
    %19 = tpu.matmul %18, %16, %cst_13 {dimension_numbers = #tpu.dot_dimension_numbers<[1], [0], [0], [1], [0, 0, 1, 1], [], []>} : vector<8x8xf32>, vector<8x256xf32>, vector<8x256xf32> -> vector<8x256xf32>
    %20 = arith.addf %12, %19 : vector<8x256xf32>
    %c15_i32 = arith.constant 15 : i32
    %21 = tpu.dynamic_rotate %3 by %c15_i32 dim 1 : vector<8x256xf32>, i32 -> vector<8x256xf32>
    %c2 = arith.constant 2 : index
    %c0_14 = arith.constant 0 : index
    %22 = vector.load %arg2[%c2, %c0_14] : memref<12x256xf32, #tpu.memory_space<vmem>>, vector<1x256xf32>
    %23 = vector.broadcast %22 : vector<1x256xf32> to vector<8x256xf32>
    %24 = arith.mulf %21, %23 : vector<8x256xf32>
    %c2_15 = arith.constant 2 : index
    %c0_16 = arith.constant 0 : index
    %c0_17 = arith.constant 0 : index
    %25 = vector.load %arg3[%c2_15, %c0_16, %c0_17] : memref<9x8x8xf32, #tpu.memory_space<vmem>>, vector<1x8x8xf32>
    %26 = vector.shape_cast %25 : vector<1x8x8xf32> to vector<8x8xf32>
    %cst_18 = arith.constant dense<0.000000e+00> : vector<8x256xf32>
    %27 = tpu.matmul %26, %24, %cst_18 {dimension_numbers = #tpu.dot_dimension_numbers<[1], [0], [0], [1], [0, 0, 1, 1], [], []>} : vector<8x8xf32>, vector<8x256xf32>, vector<8x256xf32> -> vector<8x256xf32>
    %28 = arith.addf %20, %27 : vector<8x256xf32>
    %c1_i32 = arith.constant 1 : i32
    %29 = tpu.dynamic_rotate %3 by %c1_i32 dim 1 : vector<8x256xf32>, i32 -> vector<8x256xf32>
    %c3 = arith.constant 3 : index
    %c0_19 = arith.constant 0 : index
    %30 = vector.load %arg2[%c3, %c0_19] : memref<12x256xf32, #tpu.memory_space<vmem>>, vector<1x256xf32>
    %31 = vector.broadcast %30 : vector<1x256xf32> to vector<8x256xf32>
    %32 = arith.mulf %29, %31 : vector<8x256xf32>
    %c3_20 = arith.constant 3 : index
    %c0_21 = arith.constant 0 : index
    %c0_22 = arith.constant 0 : index
    %33 = vector.load %arg3[%c3_20, %c0_21, %c0_22] : memref<9x8x8xf32, #tpu.memory_space<vmem>>, vector<1x8x8xf32>
    %34 = vector.shape_cast %33 : vector<1x8x8xf32> to vector<8x8xf32>
    %cst_23 = arith.constant dense<0.000000e+00> : vector<8x256xf32>
    %35 = tpu.matmul %34, %32, %cst_23 {dimension_numbers = #tpu.dot_dimension_numbers<[1], [0], [0], [1], [0, 0, 1, 1], [], []>} : vector<8x8xf32>, vector<8x256xf32>, vector<8x256xf32> -> vector<8x256xf32>
    %36 = arith.addf %28, %35 : vector<8x256xf32>
    %c4 = arith.constant 4 : index
    %c0_24 = arith.constant 0 : index
    %c0_25 = arith.constant 0 : index
    %37 = vector.load %arg3[%c4, %c0_24, %c0_25] : memref<9x8x8xf32, #tpu.memory_space<vmem>>, vector<1x8x8xf32>
    %38 = vector.shape_cast %37 : vector<1x8x8xf32> to vector<8x8xf32>
    %cst_26 = arith.constant dense<0.000000e+00> : vector<8x256xf32>
    %39 = tpu.matmul %38, %3, %cst_26 {dimension_numbers = #tpu.dot_dimension_numbers<[1], [0], [0], [1], [0, 0, 1, 1], [], []>} : vector<8x8xf32>, vector<8x256xf32>, vector<8x256xf32> -> vector<8x256xf32>
    %40 = arith.addf %36, %39 : vector<8x256xf32>
    %c255_i32 = arith.constant 255 : i32
    %41 = tpu.dynamic_rotate %3 by %c255_i32 dim 1 : vector<8x256xf32>, i32 -> vector<8x256xf32>
    %c4_27 = arith.constant 4 : index
    %c0_28 = arith.constant 0 : index
    %42 = vector.load %arg2[%c4_27, %c0_28] : memref<12x256xf32, #tpu.memory_space<vmem>>, vector<1x256xf32>
    %43 = vector.broadcast %42 : vector<1x256xf32> to vector<8x256xf32>
    %44 = arith.mulf %41, %43 : vector<8x256xf32>
    %c5 = arith.constant 5 : index
    %c0_29 = arith.constant 0 : index
    %c0_30 = arith.constant 0 : index
    %45 = vector.load %arg3[%c5, %c0_29, %c0_30] : memref<9x8x8xf32, #tpu.memory_space<vmem>>, vector<1x8x8xf32>
    %46 = vector.shape_cast %45 : vector<1x8x8xf32> to vector<8x8xf32>
    %cst_31 = arith.constant dense<0.000000e+00> : vector<8x256xf32>
    %47 = tpu.matmul %46, %44, %cst_31 {dimension_numbers = #tpu.dot_dimension_numbers<[1], [0], [0], [1], [0, 0, 1, 1], [], []>} : vector<8x8xf32>, vector<8x256xf32>, vector<8x256xf32> -> vector<8x256xf32>
    %48 = arith.addf %40, %47 : vector<8x256xf32>
    %c241_i32 = arith.constant 241 : i32
    %49 = tpu.dynamic_rotate %3 by %c241_i32 dim 1 : vector<8x256xf32>, i32 -> vector<8x256xf32>
    %c5_32 = arith.constant 5 : index
    %c0_33 = arith.constant 0 : index
    %50 = vector.load %arg2[%c5_32, %c0_33] : memref<12x256xf32, #tpu.memory_space<vmem>>, vector<1x256xf32>
    %51 = vector.broadcast %50 : vector<1x256xf32> to vector<8x256xf32>
    %52 = arith.mulf %49, %51 : vector<8x256xf32>
    %c6 = arith.constant 6 : index
    %c0_34 = arith.constant 0 : index
    %c0_35 = arith.constant 0 : index
    %53 = vector.load %arg3[%c6, %c0_34, %c0_35] : memref<9x8x8xf32, #tpu.memory_space<vmem>>, vector<1x8x8xf32>
    %54 = vector.shape_cast %53 : vector<1x8x8xf32> to vector<8x8xf32>
    %cst_36 = arith.constant dense<0.000000e+00> : vector<8x256xf32>
    %55 = tpu.matmul %54, %52, %cst_36 {dimension_numbers = #tpu.dot_dimension_numbers<[1], [0], [0], [1], [0, 0, 1, 1], [], []>} : vector<8x8xf32>, vector<8x256xf32>, vector<8x256xf32> -> vector<8x256xf32>
    %56 = arith.addf %48, %55 : vector<8x256xf32>
    %c240_i32 = arith.constant 240 : i32
    %57 = tpu.dynamic_rotate %3 by %c240_i32 dim 1 : vector<8x256xf32>, i32 -> vector<8x256xf32>
    %c6_37 = arith.constant 6 : index
    %c0_38 = arith.constant 0 : index
    %58 = vector.load %arg2[%c6_37, %c0_38] : memref<12x256xf32, #tpu.memory_space<vmem>>, vector<1x256xf32>
    %59 = vector.broadcast %58 : vector<1x256xf32> to vector<8x256xf32>
    %60 = arith.mulf %57, %59 : vector<8x256xf32>
    %c7 = arith.constant 7 : index
    %c0_39 = arith.constant 0 : index
    %c0_40 = arith.constant 0 : index
    %61 = vector.load %arg3[%c7, %c0_39, %c0_40] : memref<9x8x8xf32, #tpu.memory_space<vmem>>, vector<1x8x8xf32>
    %62 = vector.shape_cast %61 : vector<1x8x8xf32> to vector<8x8xf32>
    %cst_41 = arith.constant dense<0.000000e+00> : vector<8x256xf32>
    %63 = tpu.matmul %62, %60, %cst_41 {dimension_numbers = #tpu.dot_dimension_numbers<[1], [0], [0], [1], [0, 0, 1, 1], [], []>} : vector<8x8xf32>, vector<8x256xf32>, vector<8x256xf32> -> vector<8x256xf32>
    %64 = arith.addf %56, %63 : vector<8x256xf32>
    %c239_i32 = arith.constant 239 : i32
    %65 = tpu.dynamic_rotate %3 by %c239_i32 dim 1 : vector<8x256xf32>, i32 -> vector<8x256xf32>
    %c7_42 = arith.constant 7 : index
    %c0_43 = arith.constant 0 : index
    %66 = vector.load %arg2[%c7_42, %c0_43] : memref<12x256xf32, #tpu.memory_space<vmem>>, vector<1x256xf32>
    %67 = vector.broadcast %66 : vector<1x256xf32> to vector<8x256xf32>
    %68 = arith.mulf %65, %67 : vector<8x256xf32>
    %c8_44 = arith.constant 8 : index
    %c0_45 = arith.constant 0 : index
    %c0_46 = arith.constant 0 : index
    %69 = vector.load %arg3[%c8_44, %c0_45, %c0_46] : memref<9x8x8xf32, #tpu.memory_space<vmem>>, vector<1x8x8xf32>
    %70 = vector.shape_cast %69 : vector<1x8x8xf32> to vector<8x8xf32>
    %cst_47 = arith.constant dense<0.000000e+00> : vector<8x256xf32>
    %71 = tpu.matmul %70, %68, %cst_47 {dimension_numbers = #tpu.dot_dimension_numbers<[1], [0], [0], [1], [0, 0, 1, 1], [], []>} : vector<8x8xf32>, vector<8x256xf32>, vector<8x256xf32> -> vector<8x256xf32>
    %72 = arith.addf %64, %71 : vector<8x256xf32>
    %cst_48 = arith.constant 0.000000e+00 : f32
    %73 = vector.broadcast %cst_48 : f32 to vector<8x256xf32>
    %74 = arith.maximumf %72, %73 : vector<8x256xf32>
    %c0_49 = arith.constant 0 : index
    %c0_50 = arith.constant 0 : index
    %c0_51 = arith.constant 0 : index
    %75 = vector.load %arg4[%c0_49, %c0_50, %c0_51] : memref<2x8x256xf32, #tpu.memory_space<vmem>>, vector<1x8x256xf32>
    %76 = vector.shape_cast %75 : vector<1x8x256xf32> to vector<8x256xf32>
    %77 = vector.shape_cast %74 : vector<8x256xf32> to vector<1x8x256xf32>
    tpu.vector_store %arg4[%c0_49, %c0_50, %c0_51], %77 {strides = array<i32>} : memref<2x8x256xf32, #tpu.memory_space<vmem>>, vector<1x8x256xf32>,
    %c1_52 = arith.constant 1 : index
    %c0_53 = arith.constant 0 : index
    %c0_54 = arith.constant 0 : index
    %78 = vector.load %arg1[%c1_52, %c0_53, %c0_54] : memref<2x4x256xf32, #tpu.memory_space<vmem>>, vector<1x4x256xf32>
    %79 = vector.shape_cast %78 : vector<1x4x256xf32> to vector<4x256xf32>
    %80 = tpu.concatenate %79, %0 in 0 : vector<4x256xf32>, vector<4x256xf32> -> vector<8x256xf32>
    %cst_55 = arith.constant 0.000000e+00 : f32
    %81 = vector.broadcast %cst_55 : f32 to vector<8x256xf32>
    %c17_i32_56 = arith.constant 17 : i32
    %82 = tpu.dynamic_rotate %80 by %c17_i32_56 dim 1 : vector<8x256xf32>, i32 -> vector<8x256xf32>
    %c0_57 = arith.constant 0 : index
    %c0_58 = arith.constant 0 : index
    %83 = vector.load %arg2[%c0_57, %c0_58] : memref<12x256xf32, #tpu.memory_space<vmem>>, vector<1x256xf32>
    %84 = vector.broadcast %83 : vector<1x256xf32> to vector<8x256xf32>
    %85 = arith.mulf %82, %84 : vector<8x256xf32>
    %c0_59 = arith.constant 0 : index
    %c0_60 = arith.constant 0 : index
    %c0_61 = arith.constant 0 : index
    %86 = vector.load %arg3[%c0_59, %c0_60, %c0_61] : memref<9x8x8xf32, #tpu.memory_space<vmem>>, vector<1x8x8xf32>
    %87 = vector.shape_cast %86 : vector<1x8x8xf32> to vector<8x8xf32>
    %cst_62 = arith.constant dense<0.000000e+00> : vector<8x256xf32>
    %88 = tpu.matmul %87, %85, %cst_62 {dimension_numbers = #tpu.dot_dimension_numbers<[1], [0], [0], [1], [0, 0, 1, 1], [], []>} : vector<8x8xf32>, vector<8x256xf32>, vector<8x256xf32> -> vector<8x256xf32>
    %89 = arith.addf %81, %88 : vector<8x256xf32>
    %c16_i32_63 = arith.constant 16 : i32
    %90 = tpu.dynamic_rotate %80 by %c16_i32_63 dim 1 : vector<8x256xf32>, i32 -> vector<8x256xf32>
    %c1_64 = arith.constant 1 : index
    %c0_65 = arith.constant 0 : index
    %91 = vector.load %arg2[%c1_64, %c0_65] : memref<12x256xf32, #tpu.memory_space<vmem>>, vector<1x256xf32>
    %92 = vector.broadcast %91 : vector<1x256xf32> to vector<8x256xf32>
    %93 = arith.mulf %90, %92 : vector<8x256xf32>
    %c1_66 = arith.constant 1 : index
    %c0_67 = arith.constant 0 : index
    %c0_68 = arith.constant 0 : index
    %94 = vector.load %arg3[%c1_66, %c0_67, %c0_68] : memref<9x8x8xf32, #tpu.memory_space<vmem>>, vector<1x8x8xf32>
    %95 = vector.shape_cast %94 : vector<1x8x8xf32> to vector<8x8xf32>
    %cst_69 = arith.constant dense<0.000000e+00> : vector<8x256xf32>
    %96 = tpu.matmul %95, %93, %cst_69 {dimension_numbers = #tpu.dot_dimension_numbers<[1], [0], [0], [1], [0, 0, 1, 1], [], []>} : vector<8x8xf32>, vector<8x256xf32>, vector<8x256xf32> -> vector<8x256xf32>
    %97 = arith.addf %89, %96 : vector<8x256xf32>
    %c15_i32_70 = arith.constant 15 : i32
    %98 = tpu.dynamic_rotate %80 by %c15_i32_70 dim 1 : vector<8x256xf32>, i32 -> vector<8x256xf32>
    %c2_71 = arith.constant 2 : index
    %c0_72 = arith.constant 0 : index
    %99 = vector.load %arg2[%c2_71, %c0_72] : memref<12x256xf32, #tpu.memory_space<vmem>>, vector<1x256xf32>
    %100 = vector.broadcast %99 : vector<1x256xf32> to vector<8x256xf32>
    %101 = arith.mulf %98, %100 : vector<8x256xf32>
    %c2_73 = arith.constant 2 : index
    %c0_74 = arith.constant 0 : index
    %c0_75 = arith.constant 0 : index
    %102 = vector.load %arg3[%c2_73, %c0_74, %c0_75] : memref<9x8x8xf32, #tpu.memory_space<vmem>>, vector<1x8x8xf32>
    %103 = vector.shape_cast %102 : vector<1x8x8xf32> to vector<8x8xf32>
    %cst_76 = arith.constant dense<0.000000e+00> : vector<8x256xf32>
    %104 = tpu.matmul %103, %101, %cst_76 {dimension_numbers = #tpu.dot_dimension_numbers<[1], [0], [0], [1], [0, 0, 1, 1], [], []>} : vector<8x8xf32>, vector<8x256xf32>, vector<8x256xf32> -> vector<8x256xf32>
    %105 = arith.addf %97, %104 : vector<8x256xf32>
    %c1_i32_77 = arith.constant 1 : i32
    %106 = tpu.dynamic_rotate %80 by %c1_i32_77 dim 1 : vector<8x256xf32>, i32 -> vector<8x256xf32>
    %c3_78 = arith.constant 3 : index
    %c0_79 = arith.constant 0 : index
    %107 = vector.load %arg2[%c3_78, %c0_79] : memref<12x256xf32, #tpu.memory_space<vmem>>, vector<1x256xf32>
    %108 = vector.broadcast %107 : vector<1x256xf32> to vector<8x256xf32>
    %109 = arith.mulf %106, %108 : vector<8x256xf32>
    %c3_80 = arith.constant 3 : index
    %c0_81 = arith.constant 0 : index
    %c0_82 = arith.constant 0 : index
    %110 = vector.load %arg3[%c3_80, %c0_81, %c0_82] : memref<9x8x8xf32, #tpu.memory_space<vmem>>, vector<1x8x8xf32>
    %111 = vector.shape_cast %110 : vector<1x8x8xf32> to vector<8x8xf32>
    %cst_83 = arith.constant dense<0.000000e+00> : vector<8x256xf32>
    %112 = tpu.matmul %111, %109, %cst_83 {dimension_numbers = #tpu.dot_dimension_numbers<[1], [0], [0], [1], [0, 0, 1, 1], [], []>} : vector<8x8xf32>, vector<8x256xf32>, vector<8x256xf32> -> vector<8x256xf32>
    %113 = arith.addf %105, %112 : vector<8x256xf32>
    %c4_84 = arith.constant 4 : index
    %c0_85 = arith.constant 0 : index
    %c0_86 = arith.constant 0 : index
    %114 = vector.load %arg3[%c4_84, %c0_85, %c0_86] : memref<9x8x8xf32, #tpu.memory_space<vmem>>, vector<1x8x8xf32>
    %115 = vector.shape_cast %114 : vector<1x8x8xf32> to vector<8x8xf32>
    %cst_87 = arith.constant dense<0.000000e+00> : vector<8x256xf32>
    %116 = tpu.matmul %115, %80, %cst_87 {dimension_numbers = #tpu.dot_dimension_numbers<[1], [0], [0], [1], [0, 0, 1, 1], [], []>} : vector<8x8xf32>, vector<8x256xf32>, vector<8x256xf32> -> vector<8x256xf32>
    %117 = arith.addf %113, %116 : vector<8x256xf32>
    %c255_i32_88 = arith.constant 255 : i32
    %118 = tpu.dynamic_rotate %80 by %c255_i32_88 dim 1 : vector<8x256xf32>, i32 -> vector<8x256xf32>
    %c4_89 = arith.constant 4 : index
    %c0_90 = arith.constant 0 : index
    %119 = vector.load %arg2[%c4_89, %c0_90] : memref<12x256xf32, #tpu.memory_space<vmem>>, vector<1x256xf32>
    %120 = vector.broadcast %119 : vector<1x256xf32> to vector<8x256xf32>
    %121 = arith.mulf %118, %120 : vector<8x256xf32>
    %c5_91 = arith.constant 5 : index
    %c0_92 = arith.constant 0 : index
    %c0_93 = arith.constant 0 : index
    %122 = vector.load %arg3[%c5_91, %c0_92, %c0_93] : memref<9x8x8xf32, #tpu.memory_space<vmem>>, vector<1x8x8xf32>
    %123 = vector.shape_cast %122 : vector<1x8x8xf32> to vector<8x8xf32>
    %cst_94 = arith.constant dense<0.000000e+00> : vector<8x256xf32>
    %124 = tpu.matmul %123, %121, %cst_94 {dimension_numbers = #tpu.dot_dimension_numbers<[1], [0], [0], [1], [0, 0, 1, 1], [], []>} : vector<8x8xf32>, vector<8x256xf32>, vector<8x256xf32> -> vector<8x256xf32>
    %125 = arith.addf %117, %124 : vector<8x256xf32>
    %c241_i32_95 = arith.constant 241 : i32
    %126 = tpu.dynamic_rotate %80 by %c241_i32_95 dim 1 : vector<8x256xf32>, i32 -> vector<8x256xf32>
    %c5_96 = arith.constant 5 : index
    %c0_97 = arith.constant 0 : index
    %127 = vector.load %arg2[%c5_96, %c0_97] : memref<12x256xf32, #tpu.memory_space<vmem>>, vector<1x256xf32>
    %128 = vector.broadcast %127 : vector<1x256xf32> to vector<8x256xf32>
    %129 = arith.mulf %126, %128 : vector<8x256xf32>
    %c6_98 = arith.constant 6 : index
    %c0_99 = arith.constant 0 : index
    %c0_100 = arith.constant 0 : index
    %130 = vector.load %arg3[%c6_98, %c0_99, %c0_100] : memref<9x8x8xf32, #tpu.memory_space<vmem>>, vector<1x8x8xf32>
    %131 = vector.shape_cast %130 : vector<1x8x8xf32> to vector<8x8xf32>
    %cst_101 = arith.constant dense<0.000000e+00> : vector<8x256xf32>
    %132 = tpu.matmul %131, %129, %cst_101 {dimension_numbers = #tpu.dot_dimension_numbers<[1], [0], [0], [1], [0, 0, 1, 1], [], []>} : vector<8x8xf32>, vector<8x256xf32>, vector<8x256xf32> -> vector<8x256xf32>
    %133 = arith.addf %125, %132 : vector<8x256xf32>
    %c240_i32_102 = arith.constant 240 : i32
    %134 = tpu.dynamic_rotate %80 by %c240_i32_102 dim 1 : vector<8x256xf32>, i32 -> vector<8x256xf32>
    %c6_103 = arith.constant 6 : index
    %c0_104 = arith.constant 0 : index
    %135 = vector.load %arg2[%c6_103, %c0_104] : memref<12x256xf32, #tpu.memory_space<vmem>>, vector<1x256xf32>
    %136 = vector.broadcast %135 : vector<1x256xf32> to vector<8x256xf32>
    %137 = arith.mulf %134, %136 : vector<8x256xf32>
    %c7_105 = arith.constant 7 : index
    %c0_106 = arith.constant 0 : index
    %c0_107 = arith.constant 0 : index
    %138 = vector.load %arg3[%c7_105, %c0_106, %c0_107] : memref<9x8x8xf32, #tpu.memory_space<vmem>>, vector<1x8x8xf32>
    %139 = vector.shape_cast %138 : vector<1x8x8xf32> to vector<8x8xf32>
    %cst_108 = arith.constant dense<0.000000e+00> : vector<8x256xf32>
    %140 = tpu.matmul %139, %137, %cst_108 {dimension_numbers = #tpu.dot_dimension_numbers<[1], [0], [0], [1], [0, 0, 1, 1], [], []>} : vector<8x8xf32>, vector<8x256xf32>, vector<8x256xf32> -> vector<8x256xf32>
    %141 = arith.addf %133, %140 : vector<8x256xf32>
    %c239_i32_109 = arith.constant 239 : i32
    %142 = tpu.dynamic_rotate %80 by %c239_i32_109 dim 1 : vector<8x256xf32>, i32 -> vector<8x256xf32>
    %c7_110 = arith.constant 7 : index
    %c0_111 = arith.constant 0 : index
    %143 = vector.load %arg2[%c7_110, %c0_111] : memref<12x256xf32, #tpu.memory_space<vmem>>, vector<1x256xf32>
    %144 = vector.broadcast %143 : vector<1x256xf32> to vector<8x256xf32>
    %145 = arith.mulf %142, %144 : vector<8x256xf32>
    %c8_112 = arith.constant 8 : index
    %c0_113 = arith.constant 0 : index
    %c0_114 = arith.constant 0 : index
    %146 = vector.load %arg3[%c8_112, %c0_113, %c0_114] : memref<9x8x8xf32, #tpu.memory_space<vmem>>, vector<1x8x8xf32>
    %147 = vector.shape_cast %146 : vector<1x8x8xf32> to vector<8x8xf32>
    %cst_115 = arith.constant dense<0.000000e+00> : vector<8x256xf32>
    %148 = tpu.matmul %147, %145, %cst_115 {dimension_numbers = #tpu.dot_dimension_numbers<[1], [0], [0], [1], [0, 0, 1, 1], [], []>} : vector<8x8xf32>, vector<8x256xf32>, vector<8x256xf32> -> vector<8x256xf32>
    %149 = arith.addf %141, %148 : vector<8x256xf32>
    %cst_116 = arith.constant 0.000000e+00 : f32
    %150 = vector.broadcast %cst_116 : f32 to vector<8x256xf32>
    %151 = arith.maximumf %149, %150 : vector<8x256xf32>
    %c1_117 = arith.constant 1 : index
    %c0_118 = arith.constant 0 : index
    %c0_119 = arith.constant 0 : index
    %152 = vector.load %arg4[%c1_117, %c0_118, %c0_119] : memref<2x8x256xf32, #tpu.memory_space<vmem>>, vector<1x8x256xf32>
    %153 = vector.shape_cast %152 : vector<1x8x256xf32> to vector<8x256xf32>
    %154 = vector.shape_cast %151 : vector<8x256xf32> to vector<1x8x256xf32>
    tpu.vector_store %arg4[%c1_117, %c0_118, %c0_119], %154 {strides = array<i32>} : memref<2x8x256xf32, #tpu.memory_space<vmem>>, vector<1x8x256xf32>,
    return
  }
  func.func @transform_0(%arg0: i32) -> (i32, i32, i32) {
    %c0_i32 = arith.constant 0 : i32
    %c0_i32_0 = arith.constant 0 : i32
    %c0_i32_1 = arith.constant 0 : i32
    return %arg0, %c0_i32, %c0_i32_0 : i32, i32, i32
  }
  func.func @transform_1(%arg0: i32) -> (i32, i32) {
    %c0_i32 = arith.constant 0 : i32
    %c0_i32_0 = arith.constant 0 : i32
    %c0_i32_1 = arith.constant 0 : i32
    return %c0_i32, %c0_i32_0 : i32, i32
  }
  func.func @transform_2(%arg0: i32) -> (i32, i32, i32) {
    %c0_i32 = arith.constant 0 : i32
    %c0_i32_0 = arith.constant 0 : i32
    %c0_i32_1 = arith.constant 0 : i32
    %c0_i32_2 = arith.constant 0 : i32
    return %c0_i32, %c0_i32_0, %c0_i32_1 : i32, i32, i32
  }
  func.func @transform_3(%arg0: i32) -> (i32, i32, i32) {
    %c0_i32 = arith.constant 0 : i32
    %c0_i32_0 = arith.constant 0 : i32
    %c0_i32_1 = arith.constant 0 : i32
    return %arg0, %c0_i32, %c0_i32_0 : i32, i32, i32
  }
}

</mosaic_0001>

<llo_original>
// kernel: tpu_custom_call.1
$region0: #{tpu_custom_call.1}
  #allocation0 [shape = 'u32[]', space=smem, size = 0x4, offset = 0x4, fixed_abs, tag = 'smem constant byte address 0x4 - core index']
  #allocation1 [shape = 'u32[144,128]{1,0:T(1,128)}', space=vmem, size = 0x12000, scoped, tag = 'internal scratch']
  %s0 = inlined_call_operand.vmem [shape: f32[2,4,256], index: 0, kind: input, shape index: {}]
  %s1 = inlined_call_operand.vmem [shape: f32[12,256], index: 1, kind: input, shape index: {}]
  %s2 = inlined_call_operand.vmem [shape: f32[9,8,8], index: 2, kind: input, shape index: {}]
  %s3 = inlined_call_operand.hbm [shape: f32[2,8,256], index: 3, kind: output, shape index: {}]
  %s4 = sld [smem:[#allocation0]]
  $region22: #{tpu_custom_call.1} parent=0
    _
  %s6 = ssub.s32 1, %s4
  %s7 = scalar_select 0, %s6, %s4
  $region1: #{tpu_custom_call.1} parent=0
    #allocation2 [shape = 'u8[16384]{0}', space=vmem, size = 0x4000, scoped, tag = 'output window, operand 0, single buffered']
    #allocation3 [shape = 's32[1]{0}', space=sflag, size = 0x4, scoped, tag = 'scoped memory for tpu_custom_call.1']
    %8 = vsyncpa [#allocation3], 0
    // Predicated region
    $region2: #{tpu_custom_call.1} parent=1 // pred_check
      _
    $region3: #{tpu_custom_call.1} parent=1 // pred_check_branch
      %10 = sbr.rel (0) target = $region5
    $region4: #{tpu_custom_call.1} parent=1 // pred_region
      _
    $region5: #{tpu_custom_call.1} parent=1 // pred_fallthru
      _
    // Predicated region
    $region6: #{tpu_custom_call.1} parent=1 // pred_check
      _
    $region7: #{tpu_custom_call.1} parent=1 // pred_check_branch
      %12 = sbr.rel (0) target = $region9
    $region8: #{tpu_custom_call.1} parent=1 // pred_region
      _
    $region9: #{tpu_custom_call.1} parent=1 // pred_fallthru
      _
    // Predicated region
    $region10: #{tpu_custom_call.1} parent=1 // pred_check
      _
    $region11: #{tpu_custom_call.1} parent=1 // pred_check_branch
      %14 = sbr.rel (0) target = $region13
    $region12: #{tpu_custom_call.1} parent=1 // pred_region
      _
    $region13: #{tpu_custom_call.1} parent=1 // pred_fallthru
      _
    %v15 = vld [vmem:[%s1 + $0x10] sm:$0xf]
    %v16 = vld [vmem:[%s1 + $0x18] sm:$0xf]
    %v17 = vld [vmem:[%s0] sm:$0xff]
    %v19 = vcombine.high %v17, %v17
    %v23 = vrot.slane %v15, 4
    %v24 = vrot.slane %v16, 4
    %vm27 = vcmask 1043456
    %v28 = vsel %vm27, %v17, %v23
    %v29 = vsel %vm27, %v19, %v24
    %30 = vrot.lane.b32.xlu0 %v28, 17
    %v31 = vpop.permute.xlu0 %30
    %32 = vrot.lane.b32.xlu0 %v29, 17
    %v33 = vpop.permute.xlu0 %32
    %v34 = vlaneseq
    %v35 = vand.u32 %v34, 127
    %vm36 = vcmp.lt.s32.totalorder %v35, 17
    %v37 = vsel %vm36, %v31, %v33
    %v38 = vsel %vm36, %v33, %v31
    %v39 = vld [vmem:[%s1] ss:$8 sm:$0x3]
    %v41 = vlaneseq
    %v42 = vshrl.u32 %v41, 7
    %v43 = vsub.s32 0, %v42
    %v44 = vrot.slane %v39, %v43
    %v45 = vlaneseq
    %v46 = vshrl.u32 %v45, 7
    %v47 = vsub.s32 1, %v46
    %v48 = vrot.slane %v39, %v47
    %v51 = vmul.f32 %v38, %v44
    %v52 = vmul.f32 %v37, %v48
    %v53 = vld [vmem:[%s2] sm:$0xff]
    %54 = vrot.lane.b32.xlu0 %v28, 16
    %v55 = vpop.permute.xlu0 %54
    %56 = vrot.lane.b32.xlu0 %v29, 16
    %v57 = vpop.permute.xlu0 %56
    %vm58 = vcmp.lt.s32.totalorder %v35, 16
    %v59 = vsel %vm58, %v55, %v57
    %v60 = vsel %vm58, %v57, %v55
    %s61 = scalar_lea.vmem %s1, 1
    %v62 = vld [vmem:[%s61] ss:$8 sm:$0x3]
    %v64 = vlaneseq
    %v65 = vshrl.u32 %v64, 7
    %v66 = vsub.s32 0, %v65
    %v67 = vrot.slane %v62, %v66
    %v68 = vlaneseq
    %v69 = vshrl.u32 %v68, 7
    %v70 = vsub.s32 1, %v69
    %v71 = vrot.slane %v62, %v70
    %v74 = vmul.f32 %v60, %v67
    %v75 = vmul.f32 %v59, %v71
    %s76 = scalar_lea.vmem %s2, 8
    %v77 = vld [vmem:[%s76] sm:$0xff]
    %vm78 = vcmask 64512
    %v80 = vsel %vm78, %v77, 0
    %82 = vmatprep.subr.mxu0 %v75
    %83 = vmatpush1.msra.mxu0 %v74
    %84 = vmatprep.subr.mxu0 0.0
    %85 = vmatpush1.msra.mxu0 0.0
    %86 = vmatprep.subr.mxu0 0.0
    %87 = vmatpush1.msra.mxu0 0.0
    %88 = vmatprep.subr.mxu0 0.0
    %89 = vmatpush1.msra.mxu0 0.0
    %90 = vmatprep.subr.mxu0 0.0
    %91 = vmatpush1.msra.mxu0 0.0
    %92 = vmatprep.subr.mxu0 0.0
    %93 = vmatpush1.msra.mxu0 0.0
    %94 = vmatprep.subr.mxu0 0.0
    %95 = vmatpush1.msra.mxu0 0.0
    %96 = vmatprep.subr.mxu0 0.0
    %97 = vmatpush1.msra.mxu0 0.0
    %98 = vmatprep.subr.mxu0 0.0
    %99 = vmatpush1.msra.mxu0 0.0
    %100 = vmatprep.subr.mxu0 0.0
    %101 = vmatpush1.msra.mxu0 0.0
    %102 = vmatprep.subr.mxu0 0.0
    %103 = vmatpush1.msra.mxu0 0.0
    %104 = vmatprep.subr.mxu0 0.0
    %105 = vmatpush1.msra.mxu0 0.0
    %106 = vmatprep.subr.mxu0 0.0
    %107 = vmatpush1.msra.mxu0 0.0
    %108 = vmatprep.subr.mxu0 0.0
    %109 = vmatpush1.msra.mxu0 0.0
    %110 = vmatprep.subr.mxu0 0.0
    %111 = vmatpush1.msra.mxu0 0.0
    %112 = vmatprep.subr.mxu0 0.0
    %113 = vmatpush1.msra.mxu0 0.0
    %114 = vmatprep.subr.mxu0 0.0
    %115 = vmatpush1.msra.mxu0 0.0
    %116 = vmatprep.subr.mxu0 0.0
    %117 = vmatpush1.msra.mxu0 0.0
    %118 = vmatprep.subr.mxu0 0.0
    %119 = vmatpush1.msra.mxu0 0.0
    %120 = vmatprep.subr.mxu0 0.0
    %121 = vmatpush1.msra.mxu0 0.0
    %122 = vmatprep.subr.mxu0 0.0
    %123 = vmatpush1.msra.mxu0 0.0
    %124 = vmatprep.subr.mxu0 0.0
    %125 = vmatpush1.msra.mxu0 0.0
    %126 = vmatprep.subr.mxu0 0.0
    %127 = vmatpush1.msra.mxu0 0.0
    %128 = vmatprep.subr.mxu0 0.0
    %129 = vmatpush1.msra.mxu0 0.0
    %130 = vmatprep.subr.mxu0 0.0
    %131 = vmatpush1.msra.mxu0 0.0
    %132 = vmatprep.subr.mxu0 0.0
    %133 = vmatpush1.msra.mxu0 0.0
    %134 = vmatprep.subr.mxu0 0.0
    %135 = vmatpush1.msra.mxu0 0.0
    %136 = vmatprep.subr.mxu0 0.0
    %137 = vmatpush1.msra.mxu0 0.0
    %138 = vmatprep.subr.mxu0 0.0
    %139 = vmatpush1.msra.mxu0 0.0
    %140 = vmatprep.subr.mxu0 0.0
    %141 = vmatpush1.msra.mxu0 0.0
    %142 = vmatprep.subr.mxu0 0.0
    %143 = vmatpush1.msra.mxu0 0.0
    %144 = vmatprep.subr.mxu0 0.0
    %145 = vmatpush1.msra.mxu0 0.0
    %146 = vmatprep.mubr.f32.mxu0 0.0
    %147 = vmatmul.mubr.f32.gmra.mrb[0].mxu0 %v80
    %v148 = vpop.f32.mrb[0].mxu0
    %v149 = vadd.f32 0.0, %v148
    %v150 = vpop.f32.mrb[0].mxu0
    %v151 = vadd.f32 0.0, %v150
    %152 = vdwg.mxu0
    %v154 = vsel %vm78, %v53, 0
    %156 = vmatprep.subr.mxu0 %v52
    %157 = vmatpush1.msra.mxu0 %v51
    %158 = vmatprep.subr.mxu0 0.0
    %159 = vmatpush1.msra.mxu0 0.0
    %160 = vmatprep.subr.mxu0 0.0
    %161 = vmatpush1.msra.mxu0 0.0
    %162 = vmatprep.subr.mxu0 0.0
    %163 = vmatpush1.msra.mxu0 0.0
    %164 = vmatprep.subr.mxu0 0.0
    %165 = vmatpush1.msra.mxu0 0.0
    %166 = vmatprep.subr.mxu0 0.0
    %167 = vmatpush1.msra.mxu0 0.0
    %168 = vmatprep.subr.mxu0 0.0
    %169 = vmatpush1.msra.mxu0 0.0
    %170 = vmatprep.subr.mxu0 0.0
    %171 = vmatpush1.msra.mxu0 0.0
    %172 = vmatprep.subr.mxu0 0.0
    %173 = vmatpush1.msra.mxu0 0.0
    %174 = vmatprep.subr.mxu0 0.0
    %175 = vmatpush1.msra.mxu0 0.0
    %176 = vmatprep.subr.mxu0 0.0
    %177 = vmatpush1.msra.mxu0 0.0
    %178 = vmatprep.subr.mxu0 0.0
    %179 = vmatpush1.msra.mxu0 0.0
    %180 = vmatprep.subr.mxu0 0.0
    %181 = vmatpush1.msra.mxu0 0.0
    %182 = vmatprep.subr.mxu0 0.0
    %183 = vmatpush1.msra.mxu0 0.0
    %184 = vmatprep.subr.mxu0 0.0
    %185 = vmatpush1.msra.mxu0 0.0
    %186 = vmatprep.subr.mxu0 0.0
    %187 = vmatpush1.msra.mxu0 0.0
    %188 = vmatprep.subr.mxu0 0.0
    %189 = vmatpush1.msra.mxu0 0.0
    %190 = vmatprep.subr.mxu0 0.0
    %191 = vmatpush1.msra.mxu0 0.0
    %192 = vmatprep.subr.mxu0 0.0
    %193 = vmatpush1.msra.mxu0 0.0
    %194 = vmatprep.subr.mxu0 0.0
    %195 = vmatpush1.msra.mxu0 0.0
    %196 = vmatprep.subr.mxu0 0.0
    %197 = vmatpush1.msra.mxu0 0.0
    %198 = vmatprep.subr.mxu0 0.0
    %199 = vmatpush1.msra.mxu0 0.0
    %200 = vmatprep.subr.mxu0 0.0
    %201 = vmatpush1.msra.mxu0 0.0
    %202 = vmatprep.subr.mxu0 0.0
    %203 = vmatpush1.msra.mxu0 0.0
    %204 = vmatprep.subr.mxu0 0.0
    %205 = vmatpush1.msra.mxu0 0.0
    %206 = vmatprep.subr.mxu0 0.0
    %207 = vmatpush1.msra.mxu0 0.0
    %208 = vmatprep.subr.mxu0 0.0
    %209 = vmatpush1.msra.mxu0 0.0
    %210 = vmatprep.subr.mxu0 0.0
    %211 = vmatpush1.msra.mxu0 0.0
    %212 = vmatprep.subr.mxu0 0.0
    %213 = vmatpush1.msra.mxu0 0.0
    %214 = vmatprep.subr.mxu0 0.0
    %215 = vmatpush1.msra.mxu0 0.0
    %216 = vmatprep.subr.mxu0 0.0
    %217 = vmatpush1.msra.mxu0 0.0
    %218 = vmatprep.subr.mxu0 0.0
    %219 = vmatpush1.msra.mxu0 0.0
    %220 = vmatprep.mubr.f32.mxu0 0.0
    %221 = vmatmul.mubr.f32.gmra.mrb[0].mxu0 %v154
    %v222 = vpop.f32.mrb[0].mxu0
    %v223 = vadd.f32 %v149, %v222
    %v224 = vpop.f32.mrb[0].mxu0
    %v225 = vadd.f32 %v151, %v224
    %226 = vdwg.mxu0
    %227 = vrot.lane.b32.xlu0 %v28, 15
    %v228 = vpop.permute.xlu0 %227
    %229 = vrot.lane.b32.xlu0 %v29, 15
    %v230 = vpop.permute.xlu0 %229
    %vm231 = vcmp.lt.s32.totalorder %v35, 15
    %v232 = vsel %vm231, %v228, %v230
    %v233 = vsel %vm231, %v230, %v228
    %s234 = scalar_lea.vmem %s1, 2
    %v235 = vld [vmem:[%s234] ss:$8 sm:$0x3]
    %v237 = vlaneseq
    %v238 = vshrl.u32 %v237, 7
    %v239 = vsub.s32 0, %v238
    %v240 = vrot.slane %v235, %v239
    %v241 = vlaneseq
    %v242 = vshrl.u32 %v241, 7
    %v243 = vsub.s32 1, %v242
    %v244 = vrot.slane %v235, %v243
    %v247 = vmul.f32 %v233, %v240
    %v248 = vmul.f32 %v232, %v244
    %s249 = scalar_lea.vmem %s2, 16
    %v250 = vld [vmem:[%s249] sm:$0xff]
    %v252 = vsel %vm78, %v250, 0
    %254 = vmatprep.subr.mxu0 %v248
    %255 = vmatpush1.msra.mxu0 %v247
    %256 = vmatprep.subr.mxu0 0.0
    %257 = vmatpush1.msra.mxu0 0.0
    %258 = vmatprep.subr.mxu0 0.0
    %259 = vmatpush1.msra.mxu0 0.0
    %260 = vmatprep.subr.mxu0 0.0
    %261 = vmatpush1.msra.mxu0 0.0
    %262 = vmatprep.subr.mxu0 0.0
    %263 = vmatpush1.msra.mxu0 0.0
    %264 = vmatprep.subr.mxu0 0.0
    %265 = vmatpush1.msra.mxu0 0.0
    %266 = vmatprep.subr.mxu0 0.0
    %267 = vmatpush1.msra.mxu0 0.0
    %268 = vmatprep.subr.mxu0 0.0
    %269 = vmatpush1.msra.mxu0 0.0
    %270 = vmatprep.subr.mxu0 0.0
    %271 = vmatpush1.msra.mxu0 0.0
    %272 = vmatprep.subr.mxu0 0.0
    %273 = vmatpush1.msra.mxu0 0.0
    %274 = vmatprep.subr.mxu0 0.0
    %275 = vmatpush1.msra.mxu0 0.0
    %276 = vmatprep.subr.mxu0 0.0
    %277 = vmatpush1.msra.mxu0 0.0
    %278 = vmatprep.subr.mxu0 0.0
    %279 = vmatpush1.msra.mxu0 0.0
    %280 = vmatprep.subr.mxu0 0.0
    %281 = vmatpush1.msra.mxu0 0.0
    %282 = vmatprep.subr.mxu0 0.0
    %283 = vmatpush1.msra.mxu0 0.0
    %284 = vmatprep.subr.mxu0 0.0
    %285 = vmatpush1.msra.mxu0 0.0
    %286 = vmatprep.subr.mxu0 0.0
    %287 = vmatpush1.msra.mxu0 0.0
    %288 = vmatprep.subr.mxu0 0.0
    %289 = vmatpush1.msra.mxu0 0.0
    %290 = vmatprep.subr.mxu0 0.0
    %291 = vmatpush1.msra.mxu0 0.0
    %292 = vmatprep.subr.mxu0 0.0
    %293 = vmatpush1.msra.mxu0 0.0
    %294 = vmatprep.subr.mxu0 0.0
    %295 = vmatpush1.msra.mxu0 0.0
    %296 = vmatprep.subr.mxu0 0.0
    %297 = vmatpush1.msra.mxu0 0.0
    %298 = vmatprep.subr.mxu0 0.0
    %299 = vmatpush1.msra.mxu0 0.0
    %300 = vmatprep.subr.mxu0 0.0
    %301 = vmatpush1.msra.mxu0 0.0
    %302 = vmatprep.subr.mxu0 0.0
    %303 = vmatpush1.msra.mxu0 0.0
    %304 = vmatprep.subr.mxu0 0.0
    %305 = vmatpush1.msra.mxu0 0.0
    %306 = vmatprep.subr.mxu0 0.0
    %307 = vmatpush1.msra.mxu0 0.0
    %308 = vmatprep.subr.mxu0 0.0
    %309 = vmatpush1.msra.mxu0 0.0
    %310 = vmatprep.subr.mxu0 0.0
    %311 = vmatpush1.msra.mxu0 0.0
    %312 = vmatprep.subr.mxu0 0.0
    %313 = vmatpush1.msra.mxu0 0.0
    %314 = vmatprep.subr.mxu0 0.0
    %315 = vmatpush1.msra.mxu0 0.0
    %316 = vmatprep.subr.mxu0 0.0
    %317 = vmatpush1.msra.mxu0 0.0
    %318 = vmatprep.mubr.f32.mxu0 0.0
    %319 = vmatmul.mubr.f32.gmra.mrb[0].mxu0 %v252
    %v320 = vpop.f32.mrb[0].mxu0
    %v321 = vadd.f32 0.0, %v320
    %v322 = vpop.f32.mrb[0].mxu0
    %v323 = vadd.f32 0.0, %v322
    %324 = vdwg.mxu0
    %v325 = vadd.f32 %v223, %v321
    %v326 = vadd.f32 %v225, %v323
    %327 = vrot.lane.b32.xlu0 %v28, 1
    %v328 = vpop.permute.xlu0 %327
    %329 = vrot.lane.b32.xlu0 %v29, 1
    %v330 = vpop.permute.xlu0 %329
    %vm331 = vcmp.lt.s32.totalorder %v35, 1
    %v332 = vsel %vm331, %v328, %v330
    %v333 = vsel %vm331, %v330, %v328
    %s334 = scalar_lea.vmem %s1, 3
    %v335 = vld [vmem:[%s334] ss:$8 sm:$0x3]
    %v337 = vlaneseq
    %v338 = vshrl.u32 %v337, 7
    %v339 = vsub.s32 0, %v338
    %v340 = vrot.slane %v335, %v339
    %v341 = vlaneseq
    %v342 = vshrl.u32 %v341, 7
    %v343 = vsub.s32 1, %v342
    %v344 = vrot.slane %v335, %v343
    %v347 = vmul.f32 %v333, %v340
    %v348 = vmul.f32 %v332, %v344
    %s349 = scalar_lea.vmem %s2, 24
    %v350 = vld [vmem:[%s349] sm:$0xff]
    %v352 = vsel %vm78, %v350, 0
    %354 = vmatprep.subr.mxu0 %v348
    %355 = vmatpush1.msra.mxu0 %v347
    %356 = vmatprep.subr.mxu0 0.0
    %357 = vmatpush1.msra.mxu0 0.0
    %358 = vmatprep.subr.mxu0 0.0
    %359 = vmatpush1.msra.mxu0 0.0
    %360 = vmatprep.subr.mxu0 0.0
    %361 = vmatpush1.msra.mxu0 0.0
    %362 = vmatprep.subr.mxu0 0.0
    %363 = vmatpush1.msra.mxu0 0.0
    %364 = vmatprep.subr.mxu0 0.0
    %365 = vmatpush1.msra.mxu0 0.0
    %366 = vmatprep.subr.mxu0 0.0
    %367 = vmatpush1.msra.mxu0 0.0
    %368 = vmatprep.subr.mxu0 0.0
    %369 = vmatpush1.msra.mxu0 0.0
    %370 = vmatprep.subr.mxu0 0.0
    %371 = vmatpush1.msra.mxu0 0.0
    %372 = vmatprep.subr.mxu0 0.0
    %373 = vmatpush1.msra.mxu0 0.0
    %374 = vmatprep.subr.mxu0 0.0
    %375 = vmatpush1.msra.mxu0 0.0
    %376 = vmatprep.subr.mxu0 0.0
    %377 = vmatpush1.msra.mxu0 0.0
    %378 = vmatprep.subr.mxu0 0.0
    %379 = vmatpush1.msra.mxu0 0.0
    %380 = vmatprep.subr.mxu0 0.0
    %381 = vmatpush1.msra.mxu0 0.0
    %382 = vmatprep.subr.mxu0 0.0
    %383 = vmatpush1.msra.mxu0 0.0
    %384 = vmatprep.subr.mxu0 0.0
    %385 = vmatpush1.msra.mxu0 0.0
    %386 = vmatprep.subr.mxu0 0.0
    %387 = vmatpush1.msra.mxu0 0.0
    %388 = vmatprep.subr.mxu0 0.0
    %389 = vmatpush1.msra.mxu0 0.0
    %390 = vmatprep.subr.mxu0 0.0
    %391 = vmatpush1.msra.mxu0 0.0
    %392 = vmatprep.subr.mxu0 0.0
    %393 = vmatpush1.msra.mxu0 0.0
    %394 = vmatprep.subr.mxu0 0.0
    %395 = vmatpush1.msra.mxu0 0.0
    %396 = vmatprep.subr.mxu0 0.0
    %397 = vmatpush1.msra.mxu0 0.0
    %398 = vmatprep.subr.mxu0 0.0
    %399 = vmatpush1.msra.mxu0 0.0
    %400 = vmatprep.subr.mxu0 0.0
    %401 = vmatpush1.msra.mxu0 0.0
    %402 = vmatprep.subr.mxu0 0.0
    %403 = vmatpush1.msra.mxu0 0.0
    %404 = vmatprep.subr.mxu0 0.0
    %405 = vmatpush1.msra.mxu0 0.0
    %406 = vmatprep.subr.mxu0 0.0
    %407 = vmatpush1.msra.mxu0 0.0
    %408 = vmatprep.subr.mxu0 0.0
    %409 = vmatpush1.msra.mxu0 0.0
    %410 = vmatprep.subr.mxu0 0.0
    %411 = vmatpush1.msra.mxu0 0.0
    %412 = vmatprep.subr.mxu0 0.0
    %413 = vmatpush1.msra.mxu0 0.0
    %414 = vmatprep.subr.mxu0 0.0
    %415 = vmatpush1.msra.mxu0 0.0
    %416 = vmatprep.subr.mxu0 0.0
    %417 = vmatpush1.msra.mxu0 0.0
    %418 = vmatprep.mubr.f32.mxu0 0.0
    %419 = vmatmul.mubr.f32.gmra.mrb[0].mxu0 %v352
    %v420 = vpop.f32.mrb[0].mxu0
    %v421 = vadd.f32 0.0, %v420
    %v422 = vpop.f32.mrb[0].mxu0
    %v423 = vadd.f32 0.0, %v422
    %424 = vdwg.mxu0
    %v425 = vadd.f32 %v325, %v421
    %v426 = vadd.f32 %v326, %v423
    %s427 = scalar_lea.vmem %s2, 32
    %v428 = vld [vmem:[%s427] sm:$0xff]
    %v430 = vsel %vm78, %v428, 0
    %432 = vmatprep.subr.mxu0 %v29
    %433 = vmatpush1.msra.mxu0 %v28
    %434 = vmatprep.subr.mxu0 0.0
    %435 = vmatpush1.msra.mxu0 0.0
    %436 = vmatprep.subr.mxu0 0.0
    %437 = vmatpush1.msra.mxu0 0.0
    %438 = vmatprep.subr.mxu0 0.0
    %439 = vmatpush1.msra.mxu0 0.0
    %440 = vmatprep.subr.mxu0 0.0
    %441 = vmatpush1.msra.mxu0 0.0
    %442 = vmatprep.subr.mxu0 0.0
    %443 = vmatpush1.msra.mxu0 0.0
    %444 = vmatprep.subr.mxu0 0.0
    %445 = vmatpush1.msra.mxu0 0.0
    %446 = vmatprep.subr.mxu0 0.0
    %447 = vmatpush1.msra.mxu0 0.0
    %448 = vmatprep.subr.mxu0 0.0
    %449 = vmatpush1.msra.mxu0 0.0
    %450 = vmatprep.subr.mxu0 0.0
    %451 = vmatpush1.msra.mxu0 0.0
    %452 = vmatprep.subr.mxu0 0.0
    %453 = vmatpush1.msra.mxu0 0.0
    %454 = vmatprep.subr.mxu0 0.0
    %455 = vmatpush1.msra.mxu0 0.0
    %456 = vmatprep.subr.mxu0 0.0
    %457 = vmatpush1.msra.mxu0 0.0
    %458 = vmatprep.subr.mxu0 0.0
    %459 = vmatpush1.msra.mxu0 0.0
    %460 = vmatprep.subr.mxu0 0.0
    %461 = vmatpush1.msra.mxu0 0.0
    %462 = vmatprep.subr.mxu0 0.0
    %463 = vmatpush1.msra.mxu0 0.0
    %464 = vmatprep.subr.mxu0 0.0
    %465 = vmatpush1.msra.mxu0 0.0
    %466 = vmatprep.subr.mxu0 0.0
    %467 = vmatpush1.msra.mxu0 0.0
    %468 = vmatprep.subr.mxu0 0.0
    %469 = vmatpush1.msra.mxu0 0.0
    %470 = vmatprep.subr.mxu0 0.0
    %471 = vmatpush1.msra.mxu0 0.0
    %472 = vmatprep.subr.mxu0 0.0
    %473 = vmatpush1.msra.mxu0 0.0
    %474 = vmatprep.subr.mxu0 0.0
    %475 = vmatpush1.msra.mxu0 0.0
    %476 = vmatprep.subr.mxu0 0.0
    %477 = vmatpush1.msra.mxu0 0.0
    %478 = vmatprep.subr.mxu0 0.0
    %479 = vmatpush1.msra.mxu0 0.0
    %480 = vmatprep.subr.mxu0 0.0
    %481 = vmatpush1.msra.mxu0 0.0
    %482 = vmatprep.subr.mxu0 0.0
    %483 = vmatpush1.msra.mxu0 0.0
    %484 = vmatprep.subr.mxu0 0.0
    %485 = vmatpush1.msra.mxu0 0.0
    %486 = vmatprep.subr.mxu0 0.0
    %487 = vmatpush1.msra.mxu0 0.0
    %488 = vmatprep.subr.mxu0 0.0
    %489 = vmatpush1.msra.mxu0 0.0
    %490 = vmatprep.subr.mxu0 0.0
    %491 = vmatpush1.msra.mxu0 0.0
    %492 = vmatprep.subr.mxu0 0.0
    %493 = vmatpush1.msra.mxu0 0.0
    %494 = vmatprep.subr.mxu0 0.0
    %495 = vmatpush1.msra.mxu0 0.0
    %496 = vmatprep.mubr.f32.mxu0 0.0
    %497 = vmatmul.mubr.f32.gmra.mrb[0].mxu0 %v430
    %v498 = vpop.f32.mrb[0].mxu0
    %v499 = vadd.f32 0.0, %v498
    %v500 = vpop.f32.mrb[0].mxu0
    %v501 = vadd.f32 0.0, %v500
    %502 = vdwg.mxu0
    %v503 = vadd.f32 %v425, %v499
    %v504 = vadd.f32 %v426, %v501
    %505 = vrot.lane.b32.xlu0 %v28, 127
    %v506 = vpop.permute.xlu0 %505
    %507 = vrot.lane.b32.xlu0 %v29, 127
    %v508 = vpop.permute.xlu0 %507
    %vm509 = vcmp.lt.s32.totalorder %v35, 127
    %v510 = vsel %vm509, %v506, %v508
    %v511 = vsel %vm509, %v508, %v506
    %s512 = scalar_lea.vmem %s1, 4
    %v513 = vld [vmem:[%s512] ss:$8 sm:$0x3]
    %v515 = vlaneseq
    %v516 = vshrl.u32 %v515, 7
    %v517 = vsub.s32 0, %v516
    %v518 = vrot.slane %v513, %v517
    %v519 = vlaneseq
    %v520 = vshrl.u32 %v519, 7
    %v521 = vsub.s32 1, %v520
    %v522 = vrot.slane %v513, %v521
    %v525 = vmul.f32 %v510, %v518
    %v526 = vmul.f32 %v511, %v522
    %s527 = scalar_lea.vmem %s2, 40
    %v528 = vld [vmem:[%s527] sm:$0xff]
    %v530 = vsel %vm78, %v528, 0
    %532 = vmatprep.subr.mxu0 %v526
    %533 = vmatpush1.msra.mxu0 %v525
    %534 = vmatprep.subr.mxu0 0.0
    %535 = vmatpush1.msra.mxu0 0.0
    %536 = vmatprep.subr.mxu0 0.0
    %537 = vmatpush1.msra.mxu0 0.0
    %538 = vmatprep.subr.mxu0 0.0
    %539 = vmatpush1.msra.mxu0 0.0
    %540 = vmatprep.subr.mxu0 0.0
    %541 = vmatpush1.msra.mxu0 0.0
    %542 = vmatprep.subr.mxu0 0.0
    %543 = vmatpush1.msra.mxu0 0.0
    %544 = vmatprep.subr.mxu0 0.0
    %545 = vmatpush1.msra.mxu0 0.0
    %546 = vmatprep.subr.mxu0 0.0
    %547 = vmatpush1.msra.mxu0 0.0
    %548 = vmatprep.subr.mxu0 0.0
    %549 = vmatpush1.msra.mxu0 0.0
    %550 = vmatprep.subr.mxu0 0.0
    %551 = vmatpush1.msra.mxu0 0.0
    %552 = vmatprep.subr.mxu0 0.0
    %553 = vmatpush1.msra.mxu0 0.0
    %554 = vmatprep.subr.mxu0 0.0
    %555 = vmatpush1.msra.mxu0 0.0
    %556 = vmatprep.subr.mxu0 0.0
    %557 = vmatpush1.msra.mxu0 0.0
    %558 = vmatprep.subr.mxu0 0.0
    %559 = vmatpush1.msra.mxu0 0.0
    %560 = vmatprep.subr.mxu0 0.0
    %561 = vmatpush1.msra.mxu0 0.0
    %562 = vmatprep.subr.mxu0 0.0
    %563 = vmatpush1.msra.mxu0 0.0
    %564 = vmatprep.subr.mxu0 0.0
    %565 = vmatpush1.msra.mxu0 0.0
    %566 = vmatprep.subr.mxu0 0.0
    %567 = vmatpush1.msra.mxu0 0.0
    %568 = vmatprep.subr.mxu0 0.0
    %569 = vmatpush1.msra.mxu0 0.0
    %570 = vmatprep.subr.mxu0 0.0
    %571 = vmatpush1.msra.mxu0 0.0
    %572 = vmatprep.subr.mxu0 0.0
    %573 = vmatpush1.msra.mxu0 0.0
    %574 = vmatprep.subr.mxu0 0.0
    %575 = vmatpush1.msra.mxu0 0.0
    %576 = vmatprep.subr.mxu0 0.0
    %577 = vmatpush1.msra.mxu0 0.0
    %578 = vmatprep.subr.mxu0 0.0
    %579 = vmatpush1.msra.mxu0 0.0
    %580 = vmatprep.subr.mxu0 0.0
    %581 = vmatpush1.msra.mxu0 0.0
    %582 = vmatprep.subr.mxu0 0.0
    %583 = vmatpush1.msra.mxu0 0.0
    %584 = vmatprep.subr.mxu0 0.0
    %585 = vmatpush1.msra.mxu0 0.0
    %586 = vmatprep.subr.mxu0 0.0
    %587 = vmatpush1.msra.mxu0 0.0
    %588 = vmatprep.subr.mxu0 0.0
    %589 = vmatpush1.msra.mxu0 0.0
    %590 = vmatprep.subr.mxu0 0.0
    %591 = vmatpush1.msra.mxu0 0.0
    %592 = vmatprep.subr.mxu0 0.0
    %593 = vmatpush1.msra.mxu0 0.0
    %594 = vmatprep.subr.mxu0 0.0
    %595 = vmatpush1.msra.mxu0 0.0
    %596 = vmatprep.mubr.f32.mxu0 0.0
    %597 = vmatmul.mubr.f32.gmra.mrb[0].mxu0 %v530
    %v598 = vpop.f32.mrb[0].mxu0
    %v599 = vadd.f32 0.0, %v598
    %v600 = vpop.f32.mrb[0].mxu0
    %v601 = vadd.f32 0.0, %v600
    %602 = vdwg.mxu0
    %v603 = vadd.f32 %v503, %v599
    %v604 = vadd.f32 %v504, %v601
    %605 = vrot.lane.b32.xlu0 %v28, 113
    %v606 = vpop.permute.xlu0 %605
    %607 = vrot.lane.b32.xlu0 %v29, 113
    %v608 = vpop.permute.xlu0 %607
    %vm609 = vcmp.lt.s32.totalorder %v35, 113
    %v610 = vsel %vm609, %v606, %v608
    %v611 = vsel %vm609, %v608, %v606
    %s612 = scalar_lea.vmem %s1, 5
    %v613 = vld [vmem:[%s612] ss:$8 sm:$0x3]
    %v615 = vlaneseq
    %v616 = vshrl.u32 %v615, 7
    %v617 = vsub.s32 0, %v616
    %v618 = vrot.slane %v613, %v617
    %v619 = vlaneseq
    %v620 = vshrl.u32 %v619, 7
    %v621 = vsub.s32 1, %v620
    %v622 = vrot.slane %v613, %v621
    %v625 = vmul.f32 %v610, %v618
    %v626 = vmul.f32 %v611, %v622
    %s627 = scalar_lea.vmem %s2, 48
    %v628 = vld [vmem:[%s627] sm:$0xff]
    %v630 = vsel %vm78, %v628, 0
    %632 = vmatprep.subr.mxu0 %v626
    %633 = vmatpush1.msra.mxu0 %v625
    %634 = vmatprep.subr.mxu0 0.0
    %635 = vmatpush1.msra.mxu0 0.0
    %636 = vmatprep.subr.mxu0 0.0
    %637 = vmatpush1.msra.mxu0 0.0
    %638 = vmatprep.subr.mxu0 0.0
    %639 = vmatpush1.msra.mxu0 0.0
    %640 = vmatprep.subr.mxu0 0.0
    %641 = vmatpush1.msra.mxu0 0.0
    %642 = vmatprep.subr.mxu0 0.0
    %643 = vmatpush1.msra.mxu0 0.0
    %644 = vmatprep.subr.mxu0 0.0
    %645 = vmatpush1.msra.mxu0 0.0
    %646 = vmatprep.subr.mxu0 0.0
    %647 = vmatpush1.msra.mxu0 0.0
    %648 = vmatprep.subr.mxu0 0.0
    %649 = vmatpush1.msra.mxu0 0.0
    %650 = vmatprep.subr.mxu0 0.0
    %651 = vmatpush1.msra.mxu0 0.0
    %652 = vmatprep.subr.mxu0 0.0
    %653 = vmatpush1.msra.mxu0 0.0
    %654 = vmatprep.subr.mxu0 0.0
    %655 = vmatpush1.msra.mxu0 0.0
    %656 = vmatprep.subr.mxu0 0.0
    %657 = vmatpush1.msra.mxu0 0.0
    %658 = vmatprep.subr.mxu0 0.0
    %659 = vmatpush1.msra.mxu0 0.0
    %660 = vmatprep.subr.mxu0 0.0
    %661 = vmatpush1.msra.mxu0 0.0
    %662 = vmatprep.subr.mxu0 0.0
    %663 = vmatpush1.msra.mxu0 0.0
    %664 = vmatprep.subr.mxu0 0.0
    %665 = vmatpush1.msra.mxu0 0.0
    %666 = vmatprep.subr.mxu0 0.0
    %667 = vmatpush1.msra.mxu0 0.0
    %668 = vmatprep.subr.mxu0 0.0
    %669 = vmatpush1.msra.mxu0 0.0
    %670 = vmatprep.subr.mxu0 0.0
    %671 = vmatpush1.msra.mxu0 0.0
    %672 = vmatprep.subr.mxu0 0.0
    %673 = vmatpush1.msra.mxu0 0.0
    %674 = vmatprep.subr.mxu0 0.0
    %675 = vmatpush1.msra.mxu0 0.0
    %676 = vmatprep.subr.mxu0 0.0
    %677 = vmatpush1.msra.mxu0 0.0
    %678 = vmatprep.subr.mxu0 0.0
    %679 = vmatpush1.msra.mxu0 0.0
    %680 = vmatprep.subr.mxu0 0.0
    %681 = vmatpush1.msra.mxu0 0.0
    %682 = vmatprep.subr.mxu0 0.0
    %683 = vmatpush1.msra.mxu0 0.0
    %684 = vmatprep.subr.mxu0 0.0
    %685 = vmatpush1.msra.mxu0 0.0
    %686 = vmatprep.subr.mxu0 0.0
    %687 = vmatpush1.msra.mxu0 0.0
    %688 = vmatprep.subr.mxu0 0.0
    %689 = vmatpush1.msra.mxu0 0.0
    %690 = vmatprep.subr.mxu0 0.0
    %691 = vmatpush1.msra.mxu0 0.0
    %692 = vmatprep.subr.mxu0 0.0
    %693 = vmatpush1.msra.mxu0 0.0
    %694 = vmatprep.subr.mxu0 0.0
    %695 = vmatpush1.msra.mxu0 0.0
    %696 = vmatprep.mubr.f32.mxu0 0.0
    %697 = vmatmul.mubr.f32.gmra.mrb[0].mxu0 %v630
    %v698 = vpop.f32.mrb[0].mxu0
    %v699 = vadd.f32 0.0, %v698
    %v700 = vpop.f32.mrb[0].mxu0
    %v701 = vadd.f32 0.0, %v700
    %702 = vdwg.mxu0
    %v703 = vadd.f32 %v603, %v699
    %v704 = vadd.f32 %v604, %v701
    %705 = vrot.lane.b32.xlu0 %v28, 112
    %v706 = vpop.permute.xlu0 %705
    %707 = vrot.lane.b32.xlu0 %v29, 112
    %v708 = vpop.permute.xlu0 %707
    %vm709 = vcmp.lt.s32.totalorder %v35, 112
    %v710 = vsel %vm709, %v706, %v708
    %v711 = vsel %vm709, %v708, %v706
    %s712 = scalar_lea.vmem %s1, 6
    %v713 = vld [vmem:[%s712] ss:$8 sm:$0x3]
    %v715 = vlaneseq
    %v716 = vshrl.u32 %v715, 7
    %v717 = vsub.s32 0, %v716
    %v718 = vrot.slane %v713, %v717
    %v719 = vlaneseq
    %v720 = vshrl.u32 %v719, 7
    %v721 = vsub.s32 1, %v720
    %v722 = vrot.slane %v713, %v721
    %v725 = vmul.f32 %v710, %v718
    %v726 = vmul.f32 %v711, %v722
    %s727 = scalar_lea.vmem %s2, 56
    %v728 = vld [vmem:[%s727] sm:$0xff]
    %v730 = vsel %vm78, %v728, 0
    %732 = vmatprep.subr.mxu0 %v726
    %733 = vmatpush1.msra.mxu0 %v725
    %734 = vmatprep.subr.mxu0 0.0
    %735 = vmatpush1.msra.mxu0 0.0
    %736 = vmatprep.subr.mxu0 0.0
    %737 = vmatpush1.msra.mxu0 0.0
    %738 = vmatprep.subr.mxu0 0.0
    %739 = vmatpush1.msra.mxu0 0.0
    %740 = vmatprep.subr.mxu0 0.0
    %741 = vmatpush1.msra.mxu0 0.0
    %742 = vmatprep.subr.mxu0 0.0
    %743 = vmatpush1.msra.mxu0 0.0
    %744 = vmatprep.subr.mxu0 0.0
    %745 = vmatpush1.msra.mxu0 0.0
    %746 = vmatprep.subr.mxu0 0.0
    %747 = vmatpush1.msra.mxu0 0.0
    %748 = vmatprep.subr.mxu0 0.0
    %749 = vmatpush1.msra.mxu0 0.0
    %750 = vmatprep.subr.mxu0 0.0
    %751 = vmatpush1.msra.mxu0 0.0
    %752 = vmatprep.subr.mxu0 0.0
    %753 = vmatpush1.msra.mxu0 0.0
    %754 = vmatprep.subr.mxu0 0.0
    %755 = vmatpush1.msra.mxu0 0.0
    %756 = vmatprep.subr.mxu0 0.0
    %757 = vmatpush1.msra.mxu0 0.0
    %758 = vmatprep.subr.mxu0 0.0
    %759 = vmatpush1.msra.mxu0 0.0
    %760 = vmatprep.subr.mxu0 0.0
    %761 = vmatpush1.msra.mxu0 0.0
    %762 = vmatprep.subr.mxu0 0.0
    %763 = vmatpush1.msra.mxu0 0.0
    %764 = vmatprep.subr.mxu0 0.0
    %765 = vmatpush1.msra.mxu0 0.0
    %766 = vmatprep.subr.mxu0 0.0
    %767 = vmatpush1.msra.mxu0 0.0
    %768 = vmatprep.subr.mxu0 0.0
    %769 = vmatpush1.msra.mxu0 0.0
    %770 = vmatprep.subr.mxu0 0.0
    %771 = vmatpush1.msra.mxu0 0.0
    %772 = vmatprep.subr.mxu0 0.0
    %773 = vmatpush1.msra.mxu0 0.0
    %774 = vmatprep.subr.mxu0 0.0
    %775 = vmatpush1.msra.mxu0 0.0
    %776 = vmatprep.subr.mxu0 0.0
    %777 = vmatpush1.msra.mxu0 0.0
    %778 = vmatprep.subr.mxu0 0.0
    %779 = vmatpush1.msra.mxu0 0.0
    %780 = vmatprep.subr.mxu0 0.0
    %781 = vmatpush1.msra.mxu0 0.0
    %782 = vmatprep.subr.mxu0 0.0
    %783 = vmatpush1.msra.mxu0 0.0
    %784 = vmatprep.subr.mxu0 0.0
    %785 = vmatpush1.msra.mxu0 0.0
    %786 = vmatprep.subr.mxu0 0.0
    %787 = vmatpush1.msra.mxu0 0.0
    %788 = vmatprep.subr.mxu0 0.0
    %789 = vmatpush1.msra.mxu0 0.0
    %790 = vmatprep.subr.mxu0 0.0
    %791 = vmatpush1.msra.mxu0 0.0
    %792 = vmatprep.subr.mxu0 0.0
    %793 = vmatpush1.msra.mxu0 0.0
    %794 = vmatprep.subr.mxu0 0.0
    %795 = vmatpush1.msra.mxu0 0.0
    %796 = vmatprep.mubr.f32.mxu0 0.0
    %797 = vmatmul.mubr.f32.gmra.mrb[0].mxu0 %v730
    %v798 = vpop.f32.mrb[0].mxu0
    %v799 = vadd.f32 0.0, %v798
    %v800 = vpop.f32.mrb[0].mxu0
    %v801 = vadd.f32 0.0, %v800
    %802 = vdwg.mxu0
    %v803 = vadd.f32 %v703, %v799
    %v804 = vadd.f32 %v704, %v801
    %805 = vrot.lane.b32.xlu0 %v28, 111
    %v806 = vpop.permute.xlu0 %805
    %807 = vrot.lane.b32.xlu0 %v29, 111
    %v808 = vpop.permute.xlu0 %807
    %vm809 = vcmp.lt.s32.totalorder %v35, 111
    %v810 = vsel %vm809, %v806, %v808
    %v811 = vsel %vm809, %v808, %v806
    %s812 = scalar_lea.vmem %s1, 7
    %v813 = vld [vmem:[%s812] ss:$8 sm:$0x3]
    %v815 = vlaneseq
    %v816 = vshrl.u32 %v815, 7
    %v817 = vsub.s32 0, %v816
    %v818 = vrot.slane %v813, %v817
    %v819 = vlaneseq
    %v820 = vshrl.u32 %v819, 7
    %v821 = vsub.s32 1, %v820
    %v822 = vrot.slane %v813, %v821
    %v825 = vmul.f32 %v810, %v818
    %v826 = vmul.f32 %v811, %v822
    %s827 = scalar_lea.vmem %s2, 64
    %v828 = vld [vmem:[%s827] sm:$0xff]
    %v830 = vsel %vm78, %v828, 0
    %832 = vmatprep.subr.mxu0 %v826
    %833 = vmatpush1.msra.mxu0 %v825
    %834 = vmatprep.subr.mxu0 0.0
    %835 = vmatpush1.msra.mxu0 0.0
    %836 = vmatprep.subr.mxu0 0.0
    %837 = vmatpush1.msra.mxu0 0.0
    %838 = vmatprep.subr.mxu0 0.0
    %839 = vmatpush1.msra.mxu0 0.0
    %840 = vmatprep.subr.mxu0 0.0
    %841 = vmatpush1.msra.mxu0 0.0
    %842 = vmatprep.subr.mxu0 0.0
    %843 = vmatpush1.msra.mxu0 0.0
    %844 = vmatprep.subr.mxu0 0.0
    %845 = vmatpush1.msra.mxu0 0.0
    %846 = vmatprep.subr.mxu0 0.0
    %847 = vmatpush1.msra.mxu0 0.0
    %848 = vmatprep.subr.mxu0 0.0
    %849 = vmatpush1.msra.mxu0 0.0
    %850 = vmatprep.subr.mxu0 0.0
    %851 = vmatpush1.msra.mxu0 0.0
    %852 = vmatprep.subr.mxu0 0.0
    %853 = vmatpush1.msra.mxu0 0.0
    %854 = vmatprep.subr.mxu0 0.0
    %855 = vmatpush1.msra.mxu0 0.0
    %856 = vmatprep.subr.mxu0 0.0
    %857 = vmatpush1.msra.mxu0 0.0
    %858 = vmatprep.subr.mxu0 0.0
    %859 = vmatpush1.msra.mxu0 0.0
    %860 = vmatprep.subr.mxu0 0.0
    %861 = vmatpush1.msra.mxu0 0.0
    %862 = vmatprep.subr.mxu0 0.0
    %863 = vmatpush1.msra.mxu0 0.0
    %864 = vmatprep.subr.mxu0 0.0
    %865 = vmatpush1.msra.mxu0 0.0
    %866 = vmatprep.subr.mxu0 0.0
    %867 = vmatpush1.msra.mxu0 0.0
    %868 = vmatprep.subr.mxu0 0.0
    %869 = vmatpush1.msra.mxu0 0.0
    %870 = vmatprep.subr.mxu0 0.0
    %871 = vmatpush1.msra.mxu0 0.0
    %872 = vmatprep.subr.mxu0 0.0
    %873 = vmatpush1.msra.mxu0 0.0
    %874 = vmatprep.subr.mxu0 0.0
    %875 = vmatpush1.msra.mxu0 0.0
    %876 = vmatprep.subr.mxu0 0.0
    %877 = vmatpush1.msra.mxu0 0.0
    %878 = vmatprep.subr.mxu0 0.0
    %879 = vmatpush1.msra.mxu0 0.0
    %880 = vmatprep.subr.mxu0 0.0
    %881 = vmatpush1.msra.mxu0 0.0
    %882 = vmatprep.subr.mxu0 0.0
    %883 = vmatpush1.msra.mxu0 0.0
    %884 = vmatprep.subr.mxu0 0.0
    %885 = vmatpush1.msra.mxu0 0.0
    %886 = vmatprep.subr.mxu0 0.0
    %887 = vmatpush1.msra.mxu0 0.0
    %888 = vmatprep.subr.mxu0 0.0
    %889 = vmatpush1.msra.mxu0 0.0
    %890 = vmatprep.subr.mxu0 0.0
    %891 = vmatpush1.msra.mxu0 0.0
    %892 = vmatprep.subr.mxu0 0.0
    %893 = vmatpush1.msra.mxu0 0.0
    %894 = vmatprep.subr.mxu0 0.0
    %895 = vmatpush1.msra.mxu0 0.0
    %896 = vmatprep.mubr.f32.mxu0 0.0
    %897 = vmatmul.mubr.f32.gmra.mrb[0].mxu0 %v830
    %v898 = vpop.f32.mrb[0].mxu0
    %v899 = vadd.f32 0.0, %v898
    %v900 = vpop.f32.mrb[0].mxu0
    %v901 = vadd.f32 0.0, %v900
    %902 = vdwg.mxu0
    %v903 = vadd.f32 %v803, %v899
    %v904 = vadd.f32 %v804, %v901
    %v905 = vmax.f32 %v903, 0.0
    %v906 = vmax.f32 %v904, 0.0
    %907 = vst [vmem:[#allocation2] sm:$0xff] %v905
    %908 = vst [vmem:[#allocation2 + $0x8] sm:$0xff] %v906
    %s909 = scalar_lea.vmem %s0, 8
    %v910 = vld [vmem:[%s909] sm:$0xff]
    %v912 = vcombine.high %v910, %v910
    %v914 = vsel %vm27, %v910, %v23
    %v915 = vsel %vm27, %v912, %v24
    %916 = vrot.lane.b32.xlu0 %v914, 17
    %v917 = vpop.permute.xlu0 %916
    %918 = vrot.lane.b32.xlu0 %v915, 17
    %v919 = vpop.permute.xlu0 %918
    %v920 = vsel %vm36, %v917, %v919
    %v921 = vsel %vm36, %v919, %v917
    %v922 = vld [vmem:[%s1] ss:$8 sm:$0x3]
    %v924 = vlaneseq
    %v925 = vshrl.u32 %v924, 7
    %v926 = vsub.s32 0, %v925
    %v927 = vrot.slane %v922, %v926
    %v928 = vlaneseq
    %v929 = vshrl.u32 %v928, 7
    %v930 = vsub.s32 1, %v929
    %v931 = vrot.slane %v922, %v930
    %v934 = vmul.f32 %v921, %v927
    %v935 = vmul.f32 %v920, %v931
    %v936 = vld [vmem:[%s2] sm:$0xff]
    %937 = vrot.lane.b32.xlu0 %v914, 16
    %v938 = vpop.permute.xlu0 %937
    %939 = vrot.lane.b32.xlu0 %v915, 16
    %v940 = vpop.permute.xlu0 %939
    %v941 = vsel %vm58, %v938, %v940
    %v942 = vsel %vm58, %v940, %v938
    %v943 = vld [vmem:[%s61] ss:$8 sm:$0x3]
    %v945 = vlaneseq
    %v946 = vshrl.u32 %v945, 7
    %v947 = vsub.s32 0, %v946
    %v948 = vrot.slane %v943, %v947
    %v949 = vlaneseq
    %v950 = vshrl.u32 %v949, 7
    %v951 = vsub.s32 1, %v950
    %v952 = vrot.slane %v943, %v951
    %v955 = vmul.f32 %v942, %v948
    %v956 = vmul.f32 %v941, %v952
    %v957 = vld [vmem:[%s76] sm:$0xff]
    %v959 = vsel %vm78, %v957, 0
    %961 = vmatprep.subr.mxu0 %v956
    %962 = vmatpush1.msra.mxu0 %v955
    %963 = vmatprep.subr.mxu0 0.0
    %964 = vmatpush1.msra.mxu0 0.0
    %965 = vmatprep.subr.mxu0 0.0
    %966 = vmatpush1.msra.mxu0 0.0
    %967 = vmatprep.subr.mxu0 0.0
    %968 = vmatpush1.msra.mxu0 0.0
    %969 = vmatprep.subr.mxu0 0.0
    %970 = vmatpush1.msra.mxu0 0.0
    %971 = vmatprep.subr.mxu0 0.0
    %972 = vmatpush1.msra.mxu0 0.0
    %973 = vmatprep.subr.mxu0 0.0
    %974 = vmatpush1.msra.mxu0 0.0
    %975 = vmatprep.subr.mxu0 0.0
    %976 = vmatpush1.msra.mxu0 0.0
    %977 = vmatprep.subr.mxu0 0.0
    %978 = vmatpush1.msra.mxu0 0.0
    %979 = vmatprep.subr.mxu0 0.0
    %980 = vmatpush1.msra.mxu0 0.0
    %981 = vmatprep.subr.mxu0 0.0
    %982 = vmatpush1.msra.mxu0 0.0
    %983 = vmatprep.subr.mxu0 0.0
    %984 = vmatpush1.msra.mxu0 0.0
    %985 = vmatprep.subr.mxu0 0.0
    %986 = vmatpush1.msra.mxu0 0.0
    %987 = vmatprep.subr.mxu0 0.0
    %988 = vmatpush1.msra.mxu0 0.0
    %989 = vmatprep.subr.mxu0 0.0
    %990 = vmatpush1.msra.mxu0 0.0
    %991 = vmatprep.subr.mxu0 0.0
    %992 = vmatpush1.msra.mxu0 0.0
    %993 = vmatprep.subr.mxu0 0.0
    %994 = vmatpush1.msra.mxu0 0.0
    %995 = vmatprep.subr.mxu0 0.0
    %996 = vmatpush1.msra.mxu0 0.0
    %997 = vmatprep.subr.mxu0 0.0
    %998 = vmatpush1.msra.mxu0 0.0
    %999 = vmatprep.subr.mxu0 0.0
    %1000 = vmatpush1.msra.mxu0 0.0
    %1001 = vmatprep.subr.mxu0 0.0
    %1002 = vmatpush1.msra.mxu0 0.0
    %1003 = vmatprep.subr.mxu0 0.0
    %1004 = vmatpush1.msra.mxu0 0.0
    %1005 = vmatprep.subr.mxu0 0.0
    %1006 = vmatpush1.msra.mxu0 0.0
    %1007 = vmatprep.subr.mxu0 0.0
    %1008 = vmatpush1.msra.mxu0 0.0
    %1009 = vmatprep.subr.mxu0 0.0
    %1010 = vmatpush1.msra.mxu0 0.0
    %1011 = vmatprep.subr.mxu0 0.0
    %1012 = vmatpush1.msra.mxu0 0.0
    %1013 = vmatprep.subr.mxu0 0.0
    %1014 = vmatpush1.msra.mxu0 0.0
    %1015 = vmatprep.subr.mxu0 0.0
    %1016 = vmatpush1.msra.mxu0 0.0
    %1017 = vmatprep.subr.mxu0 0.0
    %1018 = vmatpush1.msra.mxu0 0.0
    %1019 = vmatprep.subr.mxu0 0.0
    %1020 = vmatpush1.msra.mxu0 0.0
    %1021 = vmatprep.subr.mxu0 0.0
    %1022 = vmatpush1.msra.mxu0 0.0
    %1023 = vmatprep.subr.mxu0 0.0
    %1024 = vmatpush1.msra.mxu0 0.0
    %1025 = vmatprep.mubr.f32.mxu0 0.0
    %1026 = vmatmul.mubr.f32.gmra.mrb[0].mxu0 %v959
    %v1027 = vpop.f32.mrb[0].mxu0
    %v1028 = vadd.f32 0.0, %v1027
    %v1029 = vpop.f32.mrb[0].mxu0
    %v1030 = vadd.f32 0.0, %v1029
    %1031 = vdwg.mxu0
    %v1033 = vsel %vm78, %v936, 0
    %1035 = vmatprep.subr.mxu0 %v935
    %1036 = vmatpush1.msra.mxu0 %v934
    %1037 = vmatprep.subr.mxu0 0.0
    %1038 = vmatpush1.msra.mxu0 0.0
    %1039 = vmatprep.subr.mxu0 0.0
    %1040 = vmatpush1.msra.mxu0 0.0
    %1041 = vmatprep.subr.mxu0 0.0
    %1042 = vmatpush1.msra.mxu0 0.0
    %1043 = vmatprep.subr.mxu0 0.0
    %1044 = vmatpush1.msra.mxu0 0.0
    %1045 = vmatprep.subr.mxu0 0.0
    %1046 = vmatpush1.msra.mxu0 0.0
    %1047 = vmatprep.subr.mxu0 0.0
    %1048 = vmatpush1.msra.mxu0 0.0
    %1049 = vmatprep.subr.mxu0 0.0
    %1050 = vmatpush1.msra.mxu0 0.0
    %1051 = vmatprep.subr.mxu0 0.0
    %1052 = vmatpush1.msra.mxu0 0.0
    %1053 = vmatprep.subr.mxu0 0.0
    %1054 = vmatpush1.msra.mxu0 0.0
    %1055 = vmatprep.subr.mxu0 0.0
    %1056 = vmatpush1.msra.mxu0 0.0
    %1057 = vmatprep.subr.mxu0 0.0
    %1058 = vmatpush1.msra.mxu0 0.0
    %1059 = vmatprep.subr.mxu0 0.0
    %1060 = vmatpush1.msra.mxu0 0.0
    %1061 = vmatprep.subr.mxu0 0.0
    %1062 = vmatpush1.msra.mxu0 0.0
    %1063 = vmatprep.subr.mxu0 0.0
    %1064 = vmatpush1.msra.mxu0 0.0
    %1065 = vmatprep.subr.mxu0 0.0
    %1066 = vmatpush1.msra.mxu0 0.0
    %1067 = vmatprep.subr.mxu0 0.0
    %1068 = vmatpush1.msra.mxu0 0.0
    %1069 = vmatprep.subr.mxu0 0.0
    %1070 = vmatpush1.msra.mxu0 0.0
    %1071 = vmatprep.subr.mxu0 0.0
    %1072 = vmatpush1.msra.mxu0 0.0
    %1073 = vmatprep.subr.mxu0 0.0
    %1074 = vmatpush1.msra.mxu0 0.0
    %1075 = vmatprep.subr.mxu0 0.0
    %1076 = vmatpush1.msra.mxu0 0.0
    %1077 = vmatprep.subr.mxu0 0.0
    %1078 = vmatpush1.msra.mxu0 0.0
    %1079 = vmatprep.subr.mxu0 0.0
    %1080 = vmatpush1.msra.mxu0 0.0
    %1081 = vmatprep.subr.mxu0 0.0
    %1082 = vmatpush1.msra.mxu0 0.0
    %1083 = vmatprep.subr.mxu0 0.0
    %1084 = vmatpush1.msra.mxu0 0.0
    %1085 = vmatprep.subr.mxu0 0.0
    %1086 = vmatpush1.msra.mxu0 0.0
    %1087 = vmatprep.subr.mxu0 0.0
    %1088 = vmatpush1.msra.mxu0 0.0
    %1089 = vmatprep.subr.mxu0 0.0
    %1090 = vmatpush1.msra.mxu0 0.0
    %1091 = vmatprep.subr.mxu0 0.0
    %1092 = vmatpush1.msra.mxu0 0.0
    %1093 = vmatprep.subr.mxu0 0.0
    %1094 = vmatpush1.msra.mxu0 0.0
    %1095 = vmatprep.subr.mxu0 0.0
    %1096 = vmatpush1.msra.mxu0 0.0
    %1097 = vmatprep.subr.mxu0 0.0
    %1098 = vmatpush1.msra.mxu0 0.0
    %1099 = vmatprep.mubr.f32.mxu0 0.0
    %1100 = vmatmul.mubr.f32.gmra.mrb[0].mxu0 %v1033
    %v1101 = vpop.f32.mrb[0].mxu0
    %v1102 = vadd.f32 %v1028, %v1101
    %v1103 = vpop.f32.mrb[0].mxu0
    %v1104 = vadd.f32 %v1030, %v1103
    %1105 = vdwg.mxu0
    %1106 = vrot.lane.b32.xlu0 %v914, 15
    %v1107 = vpop.permute.xlu0 %1106
    %1108 = vrot.lane.b32.xlu0 %v915, 15
    %v1109 = vpop.permute.xlu0 %1108
    %v1110 = vsel %vm231, %v1107, %v1109
    %v1111 = vsel %vm231, %v1109, %v1107
    %v1112 = vld [vmem:[%s234] ss:$8 sm:$0x3]
    %v1114 = vlaneseq
    %v1115 = vshrl.u32 %v1114, 7
    %v1116 = vsub.s32 0, %v1115
    %v1117 = vrot.slane %v1112, %v1116
    %v1118 = vlaneseq
    %v1119 = vshrl.u32 %v1118, 7
    %v1120 = vsub.s32 1, %v1119
    %v1121 = vrot.slane %v1112, %v1120
    %v1124 = vmul.f32 %v1111, %v1117
    %v1125 = vmul.f32 %v1110, %v1121
    %v1126 = vld [vmem:[%s249] sm:$0xff]
    %v1128 = vsel %vm78, %v1126, 0
    %1130 = vmatprep.subr.mxu0 %v1125
    %1131 = vmatpush1.msra.mxu0 %v1124
    %1132 = vmatprep.subr.mxu0 0.0
    %1133 = vmatpush1.msra.mxu0 0.0
    %1134 = vmatprep.subr.mxu0 0.0
    %1135 = vmatpush1.msra.mxu0 0.0
    %1136 = vmatprep.subr.mxu0 0.0
    %1137 = vmatpush1.msra.mxu0 0.0
    %1138 = vmatprep.subr.mxu0 0.0
    %1139 = vmatpush1.msra.mxu0 0.0
    %1140 = vmatprep.subr.mxu0 0.0
    %1141 = vmatpush1.msra.mxu0 0.0
    %1142 = vmatprep.subr.mxu0 0.0
    %1143 = vmatpush1.msra.mxu0 0.0
    %1144 = vmatprep.subr.mxu0 0.0
    %1145 = vmatpush1.msra.mxu0 0.0
    %1146 = vmatprep.subr.mxu0 0.0
    %1147 = vmatpush1.msra.mxu0 0.0
    %1148 = vmatprep.subr.mxu0 0.0
    %1149 = vmatpush1.msra.mxu0 0.0
    %1150 = vmatprep.subr.mxu0 0.0
    %1151 = vmatpush1.msra.mxu0 0.0
    %1152 = vmatprep.subr.mxu0 0.0
    %1153 = vmatpush1.msra.mxu0 0.0
    %1154 = vmatprep.subr.mxu0 0.0
    %1155 = vmatpush1.msra.mxu0 0.0
    %1156 = vmatprep.subr.mxu0 0.0
    %1157 = vmatpush1.msra.mxu0 0.0
    %1158 = vmatprep.subr.mxu0 0.0
    %1159 = vmatpush1.msra.mxu0 0.0
    %1160 = vmatprep.subr.mxu0 0.0
    %1161 = vmatpush1.msra.mxu0 0.0
    %1162 = vmatprep.subr.mxu0 0.0
    %1163 = vmatpush1.msra.mxu0 0.0
    %1164 = vmatprep.subr.mxu0 0.0
    %1165 = vmatpush1.msra.mxu0 0.0
    %1166 = vmatprep.subr.mxu0 0.0
    %1167 = vmatpush1.msra.mxu0 0.0
    %1168 = vmatprep.subr.mxu0 0.0
    %1169 = vmatpush1.msra.mxu0 0.0
    %1170 = vmatprep.subr.mxu0 0.0
    %1171 = vmatpush1.msra.mxu0 0.0
    %1172 = vmatprep.subr.mxu0 0.0
    %1173 = vmatpush1.msra.mxu0 0.0
    %1174 = vmatprep.subr.mxu0 0.0
    %1175 = vmatpush1.msra.mxu0 0.0
    %1176 = vmatprep.subr.mxu0 0.0
    %1177 = vmatpush1.msra.mxu0 0.0
    %1178 = vmatprep.subr.mxu0 0.0
    %1179 = vmatpush1.msra.mxu0 0.0
    %1180 = vmatprep.subr.mxu0 0.0
    %1181 = vmatpush1.msra.mxu0 0.0
    %1182 = vmatprep.subr.mxu0 0.0
    %1183 = vmatpush1.msra.mxu0 0.0
    %1184 = vmatprep.subr.mxu0 0.0
    %1185 = vmatpush1.msra.mxu0 0.0
    %1186 = vmatprep.subr.mxu0 0.0
    %1187 = vmatpush1.msra.mxu0 0.0
    %1188 = vmatprep.subr.mxu0 0.0
    %1189 = vmatpush1.msra.mxu0 0.0
    %1190 = vmatprep.subr.mxu0 0.0
    %1191 = vmatpush1.msra.mxu0 0.0
    %1192 = vmatprep.subr.mxu0 0.0
    %1193 = vmatpush1.msra.mxu0 0.0
    %1194 = vmatprep.mubr.f32.mxu0 0.0
    %1195 = vmatmul.mubr.f32.gmra.mrb[0].mxu0 %v1128
    %v1196 = vpop.f32.mrb[0].mxu0
    %v1197 = vadd.f32 0.0, %v1196
    %v1198 = vpop.f32.mrb[0].mxu0
    %v1199 = vadd.f32 0.0, %v1198
    %1200 = vdwg.mxu0
    %v1201 = vadd.f32 %v1102, %v1197
    %v1202 = vadd.f32 %v1104, %v1199
    %1203 = vrot.lane.b32.xlu0 %v914, 1
    %v1204 = vpop.permute.xlu0 %1203
    %1205 = vrot.lane.b32.xlu0 %v915, 1
    %v1206 = vpop.permute.xlu0 %1205
    %v1207 = vsel %vm331, %v1204, %v1206
    %v1208 = vsel %vm331, %v1206, %v1204
    %v1209 = vld [vmem:[%s334] ss:$8 sm:$0x3]
    %v1211 = vlaneseq
    %v1212 = vshrl.u32 %v1211, 7
    %v1213 = vsub.s32 0, %v1212
    %v1214 = vrot.slane %v1209, %v1213
    %v1215 = vlaneseq
    %v1216 = vshrl.u32 %v1215, 7
    %v1217 = vsub.s32 1, %v1216
    %v1218 = vrot.slane %v1209, %v1217
    %v1221 = vmul.f32 %v1208, %v1214
    %v1222 = vmul.f32 %v1207, %v1218
    %v1223 = vld [vmem:[%s349] sm:$0xff]
    %v1225 = vsel %vm78, %v1223, 0
    %1227 = vmatprep.subr.mxu0 %v1222
    %1228 = vmatpush1.msra.mxu0 %v1221
    %1229 = vmatprep.subr.mxu0 0.0
    %1230 = vmatpush1.msra.mxu0 0.0
    %1231 = vmatprep.subr.mxu0 0.0
    %1232 = vmatpush1.msra.mxu0 0.0
    %1233 = vmatprep.subr.mxu0 0.0
    %1234 = vmatpush1.msra.mxu0 0.0
    %1235 = vmatprep.subr.mxu0 0.0
    %1236 = vmatpush1.msra.mxu0 0.0
    %1237 = vmatprep.subr.mxu0 0.0
    %1238 = vmatpush1.msra.mxu0 0.0
    %1239 = vmatprep.subr.mxu0 0.0
    %1240 = vmatpush1.msra.mxu0 0.0
    %1241 = vmatprep.subr.mxu0 0.0
    %1242 = vmatpush1.msra.mxu0 0.0
    %1243 = vmatprep.subr.mxu0 0.0
    %1244 = vmatpush1.msra.mxu0 0.0
    %1245 = vmatprep.subr.mxu0 0.0
    %1246 = vmatpush1.msra.mxu0 0.0
    %1247 = vmatprep.subr.mxu0 0.0
    %1248 = vmatpush1.msra.mxu0 0.0
    %1249 = vmatprep.subr.mxu0 0.0
    %1250 = vmatpush1.msra.mxu0 0.0
    %1251 = vmatprep.subr.mxu0 0.0
    %1252 = vmatpush1.msra.mxu0 0.0
    %1253 = vmatprep.subr.mxu0 0.0
    %1254 = vmatpush1.msra.mxu0 0.0
    %1255 = vmatprep.subr.mxu0 0.0
    %1256 = vmatpush1.msra.mxu0 0.0
    %1257 = vmatprep.subr.mxu0 0.0
    %1258 = vmatpush1.msra.mxu0 0.0
    %1259 = vmatprep.subr.mxu0 0.0
    %1260 = vmatpush1.msra.mxu0 0.0
    %1261 = vmatprep.subr.mxu0 0.0
    %1262 = vmatpush1.msra.mxu0 0.0
    %1263 = vmatprep.subr.mxu0 0.0
    %1264 = vmatpush1.msra.mxu0 0.0
    %1265 = vmatprep.subr.mxu0 0.0
    %1266 = vmatpush1.msra.mxu0 0.0
    %1267 = vmatprep.subr.mxu0 0.0
    %1268 = vmatpush1.msra.mxu0 0.0
    %1269 = vmatprep.subr.mxu0 0.0
    %1270 = vmatpush1.msra.mxu0 0.0
    %1271 = vmatprep.subr.mxu0 0.0
    %1272 = vmatpush1.msra.mxu0 0.0
    %1273 = vmatprep.subr.mxu0 0.0
    %1274 = vmatpush1.msra.mxu0 0.0
    %1275 = vmatprep.subr.mxu0 0.0
    %1276 = vmatpush1.msra.mxu0 0.0
    %1277 = vmatprep.subr.mxu0 0.0
    %1278 = vmatpush1.msra.mxu0 0.0
    %1279 = vmatprep.subr.mxu0 0.0
    %1280 = vmatpush1.msra.mxu0 0.0
    %1281 = vmatprep.subr.mxu0 0.0
    %1282 = vmatpush1.msra.mxu0 0.0
    %1283 = vmatprep.subr.mxu0 0.0
    %1284 = vmatpush1.msra.mxu0 0.0
    %1285 = vmatprep.subr.mxu0 0.0
    %1286 = vmatpush1.msra.mxu0 0.0
    %1287 = vmatprep.subr.mxu0 0.0
    %1288 = vmatpush1.msra.mxu0 0.0
    %1289 = vmatprep.subr.mxu0 0.0
    %1290 = vmatpush1.msra.mxu0 0.0
    %1291 = vmatprep.mubr.f32.mxu0 0.0
    %1292 = vmatmul.mubr.f32.gmra.mrb[0].mxu0 %v1225
    %v1293 = vpop.f32.mrb[0].mxu0
    %v1294 = vadd.f32 0.0, %v1293
    %v1295 = vpop.f32.mrb[0].mxu0
    %v1296 = vadd.f32 0.0, %v1295
    %1297 = vdwg.mxu0
    %v1298 = vadd.f32 %v1201, %v1294
    %v1299 = vadd.f32 %v1202, %v1296
    %v1300 = vld [vmem:[%s427] sm:$0xff]
    %v1302 = vsel %vm78, %v1300, 0
    %1304 = vmatprep.subr.mxu0 %v915
    %1305 = vmatpush1.msra.mxu0 %v914
    %1306 = vmatprep.subr.mxu0 0.0
    %1307 = vmatpush1.msra.mxu0 0.0
    %1308 = vmatprep.subr.mxu0 0.0
    %1309 = vmatpush1.msra.mxu0 0.0
    %1310 = vmatprep.subr.mxu0 0.0
    %1311 = vmatpush1.msra.mxu0 0.0
    %1312 = vmatprep.subr.mxu0 0.0
    %1313 = vmatpush1.msra.mxu0 0.0
    %1314 = vmatprep.subr.mxu0 0.0
    %1315 = vmatpush1.msra.mxu0 0.0
    %1316 = vmatprep.subr.mxu0 0.0
    %1317 = vmatpush1.msra.mxu0 0.0
    %1318 = vmatprep.subr.mxu0 0.0
    %1319 = vmatpush1.msra.mxu0 0.0
    %1320 = vmatprep.subr.mxu0 0.0
    %1321 = vmatpush1.msra.mxu0 0.0
    %1322 = vmatprep.subr.mxu0 0.0
    %1323 = vmatpush1.msra.mxu0 0.0
    %1324 = vmatprep.subr.mxu0 0.0
    %1325 = vmatpush1.msra.mxu0 0.0
    %1326 = vmatprep.subr.mxu0 0.0
    %1327 = vmatpush1.msra.mxu0 0.0
    %1328 = vmatprep.subr.mxu0 0.0
    %1329 = vmatpush1.msra.mxu0 0.0
    %1330 = vmatprep.subr.mxu0 0.0
    %1331 = vmatpush1.msra.mxu0 0.0
    %1332 = vmatprep.subr.mxu0 0.0
    %1333 = vmatpush1.msra.mxu0 0.0
    %1334 = vmatprep.subr.mxu0 0.0
    %1335 = vmatpush1.msra.mxu0 0.0
    %1336 = vmatprep.subr.mxu0 0.0
    %1337 = vmatpush1.msra.mxu0 0.0
    %1338 = vmatprep.subr.mxu0 0.0
    %1339 = vmatpush1.msra.mxu0 0.0
    %1340 = vmatprep.subr.mxu0 0.0
    %1341 = vmatpush1.msra.mxu0 0.0
    %1342 = vmatprep.subr.mxu0 0.0
    %1343 = vmatpush1.msra.mxu0 0.0
    %1344 = vmatprep.subr.mxu0 0.0
    %1345 = vmatpush1.msra.mxu0 0.0
    %1346 = vmatprep.subr.mxu0 0.0
    %1347 = vmatpush1.msra.mxu0 0.0
    %1348 = vmatprep.subr.mxu0 0.0
    %1349 = vmatpush1.msra.mxu0 0.0
    %1350 = vmatprep.subr.mxu0 0.0
    %1351 = vmatpush1.msra.mxu0 0.0
    %1352 = vmatprep.subr.mxu0 0.0
    %1353 = vmatpush1.msra.mxu0 0.0
    %1354 = vmatprep.subr.mxu0 0.0
    %1355 = vmatpush1.msra.mxu0 0.0
    %1356 = vmatprep.subr.mxu0 0.0
    %1357 = vmatpush1.msra.mxu0 0.0
    %1358 = vmatprep.subr.mxu0 0.0
    %1359 = vmatpush1.msra.mxu0 0.0
    %1360 = vmatprep.subr.mxu0 0.0
    %1361 = vmatpush1.msra.mxu0 0.0
    %1362 = vmatprep.subr.mxu0 0.0
    %1363 = vmatpush1.msra.mxu0 0.0
    %1364 = vmatprep.subr.mxu0 0.0
    %1365 = vmatpush1.msra.mxu0 0.0
    %1366 = vmatprep.subr.mxu0 0.0
    %1367 = vmatpush1.msra.mxu0 0.0
    %1368 = vmatprep.mubr.f32.mxu0 0.0
    %1369 = vmatmul.mubr.f32.gmra.mrb[0].mxu0 %v1302
    %v1370 = vpop.f32.mrb[0].mxu0
    %v1371 = vadd.f32 0.0, %v1370
    %v1372 = vpop.f32.mrb[0].mxu0
    %v1373 = vadd.f32 0.0, %v1372
    %1374 = vdwg.mxu0
    %v1375 = vadd.f32 %v1298, %v1371
    %v1376 = vadd.f32 %v1299, %v1373
    %1377 = vrot.lane.b32.xlu0 %v914, 127
    %v1378 = vpop.permute.xlu0 %1377
    %1379 = vrot.lane.b32.xlu0 %v915, 127
    %v1380 = vpop.permute.xlu0 %1379
    %v1381 = vsel %vm509, %v1378, %v1380
    %v1382 = vsel %vm509, %v1380, %v1378
    %v1383 = vld [vmem:[%s512] ss:$8 sm:$0x3]
    %v1385 = vlaneseq
    %v1386 = vshrl.u32 %v1385, 7
    %v1387 = vsub.s32 0, %v1386
    %v1388 = vrot.slane %v1383, %v1387
    %v1389 = vlaneseq
    %v1390 = vshrl.u32 %v1389, 7
    %v1391 = vsub.s32 1, %v1390
    %v1392 = vrot.slane %v1383, %v1391
    %v1395 = vmul.f32 %v1381, %v1388
    %v1396 = vmul.f32 %v1382, %v1392
    %v1397 = vld [vmem:[%s527] sm:$0xff]
    %v1399 = vsel %vm78, %v1397, 0
    %1401 = vmatprep.subr.mxu0 %v1396
    %1402 = vmatpush1.msra.mxu0 %v1395
    %1403 = vmatprep.subr.mxu0 0.0
    %1404 = vmatpush1.msra.mxu0 0.0
    %1405 = vmatprep.subr.mxu0 0.0
    %1406 = vmatpush1.msra.mxu0 0.0
    %1407 = vmatprep.subr.mxu0 0.0
    %1408 = vmatpush1.msra.mxu0 0.0
    %1409 = vmatprep.subr.mxu0 0.0
    %1410 = vmatpush1.msra.mxu0 0.0
    %1411 = vmatprep.subr.mxu0 0.0
    %1412 = vmatpush1.msra.mxu0 0.0
    %1413 = vmatprep.subr.mxu0 0.0
    %1414 = vmatpush1.msra.mxu0 0.0
    %1415 = vmatprep.subr.mxu0 0.0
    %1416 = vmatpush1.msra.mxu0 0.0
    %1417 = vmatprep.subr.mxu0 0.0
    %1418 = vmatpush1.msra.mxu0 0.0
    %1419 = vmatprep.subr.mxu0 0.0
    %1420 = vmatpush1.msra.mxu0 0.0
    %1421 = vmatprep.subr.mxu0 0.0
    %1422 = vmatpush1.msra.mxu0 0.0
    %1423 = vmatprep.subr.mxu0 0.0
    %1424 = vmatpush1.msra.mxu0 0.0
    %1425 = vmatprep.subr.mxu0 0.0
    %1426 = vmatpush1.msra.mxu0 0.0
    %1427 = vmatprep.subr.mxu0 0.0
    %1428 = vmatpush1.msra.mxu0 0.0
    %1429 = vmatprep.subr.mxu0 0.0
    %1430 = vmatpush1.msra.mxu0 0.0
    %1431 = vmatprep.subr.mxu0 0.0
    %1432 = vmatpush1.msra.mxu0 0.0
    %1433 = vmatprep.subr.mxu0 0.0
    %1434 = vmatpush1.msra.mxu0 0.0
    %1435 = vmatprep.subr.mxu0 0.0
    %1436 = vmatpush1.msra.mxu0 0.0
    %1437 = vmatprep.subr.mxu0 0.0
    %1438 = vmatpush1.msra.mxu0 0.0
    %1439 = vmatprep.subr.mxu0 0.0
    %1440 = vmatpush1.msra.mxu0 0.0
    %1441 = vmatprep.subr.mxu0 0.0
    %1442 = vmatpush1.msra.mxu0 0.0
    %1443 = vmatprep.subr.mxu0 0.0
    %1444 = vmatpush1.msra.mxu0 0.0
    %1445 = vmatprep.subr.mxu0 0.0
    %1446 = vmatpush1.msra.mxu0 0.0
    %1447 = vmatprep.subr.mxu0 0.0
    %1448 = vmatpush1.msra.mxu0 0.0
    %1449 = vmatprep.subr.mxu0 0.0
    %1450 = vmatpush1.msra.mxu0 0.0
    %1451 = vmatprep.subr.mxu0 0.0
    %1452 = vmatpush1.msra.mxu0 0.0
    %1453 = vmatprep.subr.mxu0 0.0
    %1454 = vmatpush1.msra.mxu0 0.0
    %1455 = vmatprep.subr.mxu0 0.0
    %1456 = vmatpush1.msra.mxu0 0.0
    %1457 = vmatprep.subr.mxu0 0.0
    %1458 = vmatpush1.msra.mxu0 0.0
    %1459 = vmatprep.subr.mxu0 0.0
    %1460 = vmatpush1.msra.mxu0 0.0
    %1461 = vmatprep.subr.mxu0 0.0
    %1462 = vmatpush1.msra.mxu0 0.0
    %1463 = vmatprep.subr.mxu0 0.0
    %1464 = vmatpush1.msra.mxu0 0.0
    %1465 = vmatprep.mubr.f32.mxu0 0.0
    %1466 = vmatmul.mubr.f32.gmra.mrb[0].mxu0 %v1399
    %v1467 = vpop.f32.mrb[0].mxu0
    %v1468 = vadd.f32 0.0, %v1467
    %v1469 = vpop.f32.mrb[0].mxu0
    %v1470 = vadd.f32 0.0, %v1469
    %1471 = vdwg.mxu0
    %v1472 = vadd.f32 %v1375, %v1468
    %v1473 = vadd.f32 %v1376, %v1470
    %1474 = vrot.lane.b32.xlu0 %v914, 113
    %v1475 = vpop.permute.xlu0 %1474
    %1476 = vrot.lane.b32.xlu0 %v915, 113
    %v1477 = vpop.permute.xlu0 %1476
    %v1478 = vsel %vm609, %v1475, %v1477
    %v1479 = vsel %vm609, %v1477, %v1475
    %v1480 = vld [vmem:[%s612] ss:$8 sm:$0x3]
    %v1482 = vlaneseq
    %v1483 = vshrl.u32 %v1482, 7
    %v1484 = vsub.s32 0, %v1483
    %v1485 = vrot.slane %v1480, %v1484
    %v1486 = vlaneseq
    %v1487 = vshrl.u32 %v1486, 7
    %v1488 = vsub.s32 1, %v1487
    %v1489 = vrot.slane %v1480, %v1488
    %v1492 = vmul.f32 %v1478, %v1485
    %v1493 = vmul.f32 %v1479, %v1489
    %v1494 = vld [vmem:[%s627] sm:$0xff]
    %v1496 = vsel %vm78, %v1494, 0
    %1498 = vmatprep.subr.mxu0 %v1493
    %1499 = vmatpush1.msra.mxu0 %v1492
    %1500 = vmatprep.subr.mxu0 0.0
    %1501 = vmatpush1.msra.mxu0 0.0
    %1502 = vmatprep.subr.mxu0 0.0
    %1503 = vmatpush1.msra.mxu0 0.0
    %1504 = vmatprep.subr.mxu0 0.0
    %1505 = vmatpush1.msra.mxu0 0.0
    %1506 = vmatprep.subr.mxu0 0.0
    %1507 = vmatpush1.msra.mxu0 0.0
    %1508 = vmatprep.subr.mxu0 0.0
    %1509 = vmatpush1.msra.mxu0 0.0
    %1510 = vmatprep.subr.mxu0 0.0
    %1511 = vmatpush1.msra.mxu0 0.0
    %1512 = vmatprep.subr.mxu0 0.0
    %1513 = vmatpush1.msra.mxu0 0.0
    %1514 = vmatprep.subr.mxu0 0.0
    %1515 = vmatpush1.msra.mxu0 0.0
    %1516 = vmatprep.subr.mxu0 0.0
    %1517 = vmatpush1.msra.mxu0 0.0
    %1518 = vmatprep.subr.mxu0 0.0
    %1519 = vmatpush1.msra.mxu0 0.0
    %1520 = vmatprep.subr.mxu0 0.0
    %1521 = vmatpush1.msra.mxu0 0.0
    %1522 = vmatprep.subr.mxu0 0.0
    %1523 = vmatpush1.msra.mxu0 0.0
    %1524 = vmatprep.subr.mxu0 0.0
    %1525 = vmatpush1.msra.mxu0 0.0
    %1526 = vmatprep.subr.mxu0 0.0
    %1527 = vmatpush1.msra.mxu0 0.0
    %1528 = vmatprep.subr.mxu0 0.0
    %1529 = vmatpush1.msra.mxu0 0.0
    %1530 = vmatprep.subr.mxu0 0.0
    %1531 = vmatpush1.msra.mxu0 0.0
    %1532 = vmatprep.subr.mxu0 0.0
    %1533 = vmatpush1.msra.mxu0 0.0
    %1534 = vmatprep.subr.mxu0 0.0
    %1535 = vmatpush1.msra.mxu0 0.0
    %1536 = vmatprep.subr.mxu0 0.0
    %1537 = vmatpush1.msra.mxu0 0.0
    %1538 = vmatprep.subr.mxu0 0.0
    %1539 = vmatpush1.msra.mxu0 0.0
    %1540 = vmatprep.subr.mxu0 0.0
    %1541 = vmatpush1.msra.mxu0 0.0
    %1542 = vmatprep.subr.mxu0 0.0
    %1543 = vmatpush1.msra.mxu0 0.0
    %1544 = vmatprep.subr.mxu0 0.0
    %1545 = vmatpush1.msra.mxu0 0.0
    %1546 = vmatprep.subr.mxu0 0.0
    %1547 = vmatpush1.msra.mxu0 0.0
    %1548 = vmatprep.subr.mxu0 0.0
    %1549 = vmatpush1.msra.mxu0 0.0
    %1550 = vmatprep.subr.mxu0 0.0
    %1551 = vmatpush1.msra.mxu0 0.0
    %1552 = vmatprep.subr.mxu0 0.0
    %1553 = vmatpush1.msra.mxu0 0.0
    %1554 = vmatprep.subr.mxu0 0.0
    %1555 = vmatpush1.msra.mxu0 0.0
    %1556 = vmatprep.subr.mxu0 0.0
    %1557 = vmatpush1.msra.mxu0 0.0
    %1558 = vmatprep.subr.mxu0 0.0
    %1559 = vmatpush1.msra.mxu0 0.0
    %1560 = vmatprep.subr.mxu0 0.0
    %1561 = vmatpush1.msra.mxu0 0.0
    %1562 = vmatprep.mubr.f32.mxu0 0.0
    %1563 = vmatmul.mubr.f32.gmra.mrb[0].mxu0 %v1496
    %v1564 = vpop.f32.mrb[0].mxu0
    %v1565 = vadd.f32 0.0, %v1564
    %v1566 = vpop.f32.mrb[0].mxu0
    %v1567 = vadd.f32 0.0, %v1566
    %1568 = vdwg.mxu0
    %v1569 = vadd.f32 %v1472, %v1565
    %v1570 = vadd.f32 %v1473, %v1567
    %1571 = vrot.lane.b32.xlu0 %v914, 112
    %v1572 = vpop.permute.xlu0 %1571
    %1573 = vrot.lane.b32.xlu0 %v915, 112
    %v1574 = vpop.permute.xlu0 %1573
    %v1575 = vsel %vm709, %v1572, %v1574
    %v1576 = vsel %vm709, %v1574, %v1572
    %v1577 = vld [vmem:[%s712] ss:$8 sm:$0x3]
    %v1579 = vlaneseq
    %v1580 = vshrl.u32 %v1579, 7
    %v1581 = vsub.s32 0, %v1580
    %v1582 = vrot.slane %v1577, %v1581
    %v1583 = vlaneseq
    %v1584 = vshrl.u32 %v1583, 7
    %v1585 = vsub.s32 1, %v1584
    %v1586 = vrot.slane %v1577, %v1585
    %v1589 = vmul.f32 %v1575, %v1582
    %v1590 = vmul.f32 %v1576, %v1586
    %v1591 = vld [vmem:[%s727] sm:$0xff]
    %v1593 = vsel %vm78, %v1591, 0
    %1595 = vmatprep.subr.mxu0 %v1590
    %1596 = vmatpush1.msra.mxu0 %v1589
    %1597 = vmatprep.subr.mxu0 0.0
    %1598 = vmatpush1.msra.mxu0 0.0
    %1599 = vmatprep.subr.mxu0 0.0
    %1600 = vmatpush1.msra.mxu0 0.0
    %1601 = vmatprep.subr.mxu0 0.0
    %1602 = vmatpush1.msra.mxu0 0.0
    %1603 = vmatprep.subr.mxu0 0.0
    %1604 = vmatpush1.msra.mxu0 0.0
    %1605 = vmatprep.subr.mxu0 0.0
    %1606 = vmatpush1.msra.mxu0 0.0
    %1607 = vmatprep.subr.mxu0 0.0
    %1608 = vmatpush1.msra.mxu0 0.0
    %1609 = vmatprep.subr.mxu0 0.0
    %1610 = vmatpush1.msra.mxu0 0.0
    %1611 = vmatprep.subr.mxu0 0.0
    %1612 = vmatpush1.msra.mxu0 0.0
    %1613 = vmatprep.subr.mxu0 0.0
    %1614 = vmatpush1.msra.mxu0 0.0
    %1615 = vmatprep.subr.mxu0 0.0
    %1616 = vmatpush1.msra.mxu0 0.0
    %1617 = vmatprep.subr.mxu0 0.0
    %1618 = vmatpush1.msra.mxu0 0.0
    %1619 = vmatprep.subr.mxu0 0.0
    %1620 = vmatpush1.msra.mxu0 0.0
    %1621 = vmatprep.subr.mxu0 0.0
    %1622 = vmatpush1.msra.mxu0 0.0
    %1623 = vmatprep.subr.mxu0 0.0
    %1624 = vmatpush1.msra.mxu0 0.0
    %1625 = vmatprep.subr.mxu0 0.0
    %1626 = vmatpush1.msra.mxu0 0.0
    %1627 = vmatprep.subr.mxu0 0.0
    %1628 = vmatpush1.msra.mxu0 0.0
    %1629 = vmatprep.subr.mxu0 0.0
    %1630 = vmatpush1.msra.mxu0 0.0
    %1631 = vmatprep.subr.mxu0 0.0
    %1632 = vmatpush1.msra.mxu0 0.0
    %1633 = vmatprep.subr.mxu0 0.0
    %1634 = vmatpush1.msra.mxu0 0.0
    %1635 = vmatprep.subr.mxu0 0.0
    %1636 = vmatpush1.msra.mxu0 0.0
    %1637 = vmatprep.subr.mxu0 0.0
    %1638 = vmatpush1.msra.mxu0 0.0
    %1639 = vmatprep.subr.mxu0 0.0
    %1640 = vmatpush1.msra.mxu0 0.0
    %1641 = vmatprep.subr.mxu0 0.0
    %1642 = vmatpush1.msra.mxu0 0.0
    %1643 = vmatprep.subr.mxu0 0.0
    %1644 = vmatpush1.msra.mxu0 0.0
    %1645 = vmatprep.subr.mxu0 0.0
    %1646 = vmatpush1.msra.mxu0 0.0
    %1647 = vmatprep.subr.mxu0 0.0
    %1648 = vmatpush1.msra.mxu0 0.0
    %1649 = vmatprep.subr.mxu0 0.0
    %1650 = vmatpush1.msra.mxu0 0.0
    %1651 = vmatprep.subr.mxu0 0.0
    %1652 = vmatpush1.msra.mxu0 0.0
    %1653 = vmatprep.subr.mxu0 0.0
    %1654 = vmatpush1.msra.mxu0 0.0
    %1655 = vmatprep.subr.mxu0 0.0
    %1656 = vmatpush1.msra.mxu0 0.0
    %1657 = vmatprep.subr.mxu0 0.0
    %1658 = vmatpush1.msra.mxu0 0.0
    %1659 = vmatprep.mubr.f32.mxu0 0.0
    %1660 = vmatmul.mubr.f32.gmra.mrb[0].mxu0 %v1593
    %v1661 = vpop.f32.mrb[0].mxu0
    %v1662 = vadd.f32 0.0, %v1661
    %v1663 = vpop.f32.mrb[0].mxu0
    %v1664 = vadd.f32 0.0, %v1663
    %1665 = vdwg.mxu0
    %v1666 = vadd.f32 %v1569, %v1662
    %v1667 = vadd.f32 %v1570, %v1664
    %1668 = vrot.lane.b32.xlu0 %v914, 111
    %v1669 = vpop.permute.xlu0 %1668
    %1670 = vrot.lane.b32.xlu0 %v915, 111
    %v1671 = vpop.permute.xlu0 %1670
    %v1672 = vsel %vm809, %v1669, %v1671
    %v1673 = vsel %vm809, %v1671, %v1669
    %v1674 = vld [vmem:[%s812] ss:$8 sm:$0x3]
    %v1676 = vlaneseq
    %v1677 = vshrl.u32 %v1676, 7
    %v1678 = vsub.s32 0, %v1677
    %v1679 = vrot.slane %v1674, %v1678
    %v1680 = vlaneseq
    %v1681 = vshrl.u32 %v1680, 7
    %v1682 = vsub.s32 1, %v1681
    %v1683 = vrot.slane %v1674, %v1682
    %v1686 = vmul.f32 %v1672, %v1679
    %v1687 = vmul.f32 %v1673, %v1683
    %v1688 = vld [vmem:[%s827] sm:$0xff]
    %v1690 = vsel %vm78, %v1688, 0
    %1692 = vmatprep.subr.mxu0 %v1687
    %1693 = vmatpush1.msra.mxu0 %v1686
    %1694 = vmatprep.subr.mxu0 0.0
    %1695 = vmatpush1.msra.mxu0 0.0
    %1696 = vmatprep.subr.mxu0 0.0
    %1697 = vmatpush1.msra.mxu0 0.0
    %1698 = vmatprep.subr.mxu0 0.0
    %1699 = vmatpush1.msra.mxu0 0.0
    %1700 = vmatprep.subr.mxu0 0.0
    %1701 = vmatpush1.msra.mxu0 0.0
    %1702 = vmatprep.subr.mxu0 0.0
    %1703 = vmatpush1.msra.mxu0 0.0
    %1704 = vmatprep.subr.mxu0 0.0
    %1705 = vmatpush1.msra.mxu0 0.0
    %1706 = vmatprep.subr.mxu0 0.0
    %1707 = vmatpush1.msra.mxu0 0.0
    %1708 = vmatprep.subr.mxu0 0.0
    %1709 = vmatpush1.msra.mxu0 0.0
    %1710 = vmatprep.subr.mxu0 0.0
    %1711 = vmatpush1.msra.mxu0 0.0
    %1712 = vmatprep.subr.mxu0 0.0
    %1713 = vmatpush1.msra.mxu0 0.0
    %1714 = vmatprep.subr.mxu0 0.0
    %1715 = vmatpush1.msra.mxu0 0.0
    %1716 = vmatprep.subr.mxu0 0.0
    %1717 = vmatpush1.msra.mxu0 0.0
    %1718 = vmatprep.subr.mxu0 0.0
    %1719 = vmatpush1.msra.mxu0 0.0
    %1720 = vmatprep.subr.mxu0 0.0
    %1721 = vmatpush1.msra.mxu0 0.0
    %1722 = vmatprep.subr.mxu0 0.0
    %1723 = vmatpush1.msra.mxu0 0.0
    %1724 = vmatprep.subr.mxu0 0.0
    %1725 = vmatpush1.msra.mxu0 0.0
    %1726 = vmatprep.subr.mxu0 0.0
    %1727 = vmatpush1.msra.mxu0 0.0
    %1728 = vmatprep.subr.mxu0 0.0
    %1729 = vmatpush1.msra.mxu0 0.0
    %1730 = vmatprep.subr.mxu0 0.0
    %1731 = vmatpush1.msra.mxu0 0.0
    %1732 = vmatprep.subr.mxu0 0.0
    %1733 = vmatpush1.msra.mxu0 0.0
    %1734 = vmatprep.subr.mxu0 0.0
    %1735 = vmatpush1.msra.mxu0 0.0
    %1736 = vmatprep.subr.mxu0 0.0
    %1737 = vmatpush1.msra.mxu0 0.0
    %1738 = vmatprep.subr.mxu0 0.0
    %1739 = vmatpush1.msra.mxu0 0.0
    %1740 = vmatprep.subr.mxu0 0.0
    %1741 = vmatpush1.msra.mxu0 0.0
    %1742 = vmatprep.subr.mxu0 0.0
    %1743 = vmatpush1.msra.mxu0 0.0
    %1744 = vmatprep.subr.mxu0 0.0
    %1745 = vmatpush1.msra.mxu0 0.0
    %1746 = vmatprep.subr.mxu0 0.0
    %1747 = vmatpush1.msra.mxu0 0.0
    %1748 = vmatprep.subr.mxu0 0.0
    %1749 = vmatpush1.msra.mxu0 0.0
    %1750 = vmatprep.subr.mxu0 0.0
    %1751 = vmatpush1.msra.mxu0 0.0
    %1752 = vmatprep.subr.mxu0 0.0
    %1753 = vmatpush1.msra.mxu0 0.0
    %1754 = vmatprep.subr.mxu0 0.0
    %1755 = vmatpush1.msra.mxu0 0.0
    %1756 = vmatprep.mubr.f32.mxu0 0.0
    %1757 = vmatmul.mubr.f32.gmra.mrb[0].mxu0 %v1690
    %v1758 = vpop.f32.mrb[0].mxu0
    %v1759 = vadd.f32 0.0, %v1758
    %v1760 = vpop.f32.mrb[0].mxu0
    %v1761 = vadd.f32 0.0, %v1760
    %1762 = vdwg.mxu0
    %v1763 = vadd.f32 %v1666, %v1759
    %v1764 = vadd.f32 %v1667, %v1761
    %v1765 = vmax.f32 %v1763, 0.0
    %v1766 = vmax.f32 %v1764, 0.0
    %s1767 = scalar_lea.vmem [#allocation2], 16
    %1768 = vst [vmem:[%s1767] sm:$0xff] %v1765
    %1769 = vst [vmem:[%s1767 + $0x8] sm:$0xff] %v1766
    // Predicated region
    $region14: #{tpu_custom_call.1} parent=1 // pred_check
      _
    $region15: #{tpu_custom_call.1} parent=1 // pred_check_branch
      %1771 = sbr.rel (0) target = $region17
    $region16: #{tpu_custom_call.1} parent=1 // pred_region
      %s1773 = ssub.s32 512, 512
      %1774 = vsyncadd [#allocation3], %s1773
      %s1775 = sshll.u32 [#allocation2], 4
      %s1776 = int_to_ptr.vmem [resolvable:$true] %s1775
      %1781 = dma.vmem_to_hbm [thread:$0]  %s1776, 512, %s3, [#allocation3], 256, 256, 16
    $region17: #{tpu_custom_call.1} parent=1 // pred_fallthru
      _
    // Predicated region
    $region18: #{tpu_custom_call.1} parent=1 // pred_check
      _
    $region19: #{tpu_custom_call.1} parent=1 // pred_check_branch
      %1783 = sbr.rel (0) target = $region21
    $region20: #{tpu_custom_call.1} parent=1 // pred_region
      %1784 = dma.done [#allocation3], 512
    $region21: #{tpu_custom_call.1} parent=1 // pred_fallthru
      _
    %1785 = vsyncpa [#allocation3], 1

</llo_original>
